<compile_context>
chip_gen: v7x
topology: tpu7x:2x2x1
jax: 0.10.0
libtpu: 0.0.40
codegen_flags: <defaults>
</compile_context>

<pallas_src>
import functools

import jax
import jax.numpy as jnp
from jax.experimental import pallas as pl
from jax.experimental.pallas import tpu as pltpu


# ----------------------------------------------------------------------------
# Fused Pallas kernel: num_layers LSTM layers + last-row Linear, one launch.
# ----------------------------------------------------------------------------
def _make_fused_rnn_kernel(num_layers, S, H):
    """Ref layout (positional):
      inputs : x (S, D_in),
               wih_0..wih_{L-1} (D_l, 4H), whh_0..whh_{L-1} (H, 4H),
               b_0..b_{L-1} (1, 4H),
               lin_w (H, O), lin_b (1, O), x_pre (1, H)
      outputs: pred (1, O), xt (1, H)
      scratch: seq_scr (S, H) VMEM, xg_scr (S, 4H) VMEM
    PyTorch gate order along 4H: i, f, g, o.
    """

    def kernel(*refs):
        pos = 0
        x_ref = refs[pos]; pos += 1
        wih_refs = refs[pos:pos + num_layers]; pos += num_layers
        whh_refs = refs[pos:pos + num_layers]; pos += num_layers
        b_refs = refs[pos:pos + num_layers]; pos += num_layers
        linw_ref, linb_ref, xpre_ref = refs[pos:pos + 3]; pos += 3
        pred_ref, xt_ref = refs[pos:pos + 2]; pos += 2
        seq_scr, xg_scr = refs[pos:pos + 2]

        h = jnp.zeros((1, H), jnp.float32)
        for layer in range(num_layers):
            is_top = layer == num_layers - 1
            layer_in = x_ref if layer == 0 else seq_scr

            # Hoisted input projection + fused bias: one GEMM for the whole
            # sequence, so the recurrent loop only carries h @ W_hh.
            xg_scr[...] = (
                jnp.dot(layer_in[...], wih_refs[layer][...],
                        preferred_element_type=jnp.float32)
                + b_refs[layer][...]
            )                                                       # (S, 4H)

            whh = whh_refs[layer][...]          # (H, 4H), loaded once per layer
            h = jnp.zeros((1, H), jnp.float32)
            c = jnp.zeros((1, H), jnp.float32)

            # S is small & static -> full unroll (scheduler sees across steps).
            for t in range(S):
                gates = (
                    jnp.dot(h, whh, preferred_element_type=jnp.float32)
                    + xg_scr[pl.ds(t, 1), :]
                )                                                   # (1, 4H)
                # One full-width sigmoid over the 128-lane gates row covers the
                # i, f, o gates in a single EUP pass; tanh only on the g slice.
                sig = jax.nn.sigmoid(gates)
                g_g = jnp.tanh(gates[:, 2 * H:3 * H])
                i_g = sig[:, 0 * H:1 * H]
                f_g = sig[:, 1 * H:2 * H]
                o_g = sig[:, 3 * H:4 * H]

                c = f_g * c + i_g * g_g
                h = o_g * jnp.tanh(c)

                if not is_top:
                    # Only non-top layers need their full hidden sequence (it
                    # feeds the next layer's hoisted GEMM); stays in VMEM.
                    seq_scr[pl.ds(t, 1), :] = h

        # xt = last-timestep hidden of the top layer.
        xt_ref[...] = h

        # predictions: only the last row of Linear(lstm_out) is consumed, and
        # that row of lstm_out was overwritten with x_pre -> Linear(x_pre).
        pred_ref[...] = (
            jnp.dot(xpre_ref[...], linw_ref[...],
                    preferred_element_type=jnp.float32)
            + linb_ref[...]
        )

    return kernel


def _vmem_spec():
    return pl.BlockSpec(memory_space=pltpu.MemorySpace.VMEM)


# ----------------------------------------------------------------------------
# Forward wrapper: single pallas_call, everything resident in VMEM.
# ----------------------------------------------------------------------------
@functools.partial(jax.jit, static_argnames=("output_step", "output_dim"))
def rnn_forward(kparams, input_seq, *, output_step, output_dim):
    """input_seq: (1, S, input_dim), batch_first with batch == 1 (as in PyTorch)."""
    x = input_seq[0]                                   # (S, D_in)
    S = x.shape[0]
    num_layers = len(kparams["wih_t"])
    H = kparams["whh_t"][0].shape[0]
    O = kparams["lin_b"].shape[1]

    kernel = _make_fused_rnn_kernel(num_layers, S, H)
    n_inputs = 1 + 3 * num_layers + 3

    pred, xt = pl.pallas_call(
        kernel,
        out_shape=(
            jax.ShapeDtypeStruct((1, O), jnp.float32),     # predictions row
            jax.ShapeDtypeStruct((1, H), jnp.float32),     # xt
        ),
        in_specs=[_vmem_spec() for _ in range(n_inputs)],
        out_specs=(_vmem_spec(), _vmem_spec()),
        scratch_shapes=[
            pltpu.VMEM((S, H), jnp.float32),        # inter-layer hidden sequence
            pltpu.VMEM((S, 4 * H), jnp.float32),    # hoisted input projection
        ],
    )(
        x,
        *kparams["wih_t"], *kparams["whh_t"], *kparams["bias"],
        kparams["lin_w_t"], kparams["lin_b"], kparams["x_pre"],
    )
    predictions = pred.reshape(output_step, output_dim)
    return predictions, xt.reshape(H, 1)


# ----------------------------------------------------------------------------
# Parameters: PyTorch layout for init/reference, one-time prep for the kernel.
# ----------------------------------------------------------------------------
def init_rnn_params(key, input_dim, hidden_size, num_layers, output_step, output_dim):
    params = {"lstm": []}
    k = 1.0 / jnp.sqrt(hidden_size)
    for layer in range(num_layers):
        d_in = input_dim if layer == 0 else hidden_size
        key, k1, k2, k3, k4 = jax.random.split(key, 5)
        params["lstm"].append(dict(
            w_ih=jax.random.uniform(k1, (4 * hidden_size, d_in), jnp.float32, -k, k),
            w_hh=jax.random.uniform(k2, (4 * hidden_size, hidden_size), jnp.float32, -k, k),
            b_ih=jax.random.uniform(k3, (4 * hidden_size,), jnp.float32, -k, k),
            b_hh=jax.random.uniform(k4, (4 * hidden_size,), jnp.float32, -k, k),
        ))
    key, k5, k6 = jax.random.split(key, 3)
    out = output_step * output_dim
    params["lin_w"] = jax.random.uniform(k5, (out, hidden_size), jnp.float32, -k, k)
    params["lin_b"] = jax.random.uniform(k6, (out,), jnp.float32, -k, k)
    # self.x_pre = np.array([0, 0]) in the original; semantically it replaces the
    # last-timestep hidden row with stored (zero) values before the Linear.
    params["x_pre"] = jnp.zeros((hidden_size,), jnp.float32)
    return params


def prepare_kernel_params(params):
    """One-time layout prep: transposes + b_ih+b_hh fusion, done outside the
    jitted forward so no per-call transpose/add ops precede the kernel."""
    H = params["lstm"][0]["w_hh"].shape[1]
    return {
        "wih_t": [jnp.transpose(lp["w_ih"]) for lp in params["lstm"]],            # (D, 4H)
        "whh_t": [jnp.transpose(lp["w_hh"]) for lp in params["lstm"]],            # (H, 4H)
        "bias": [(lp["b_ih"] + lp["b_hh"]).reshape(1, 4 * H) for lp in params["lstm"]],
        "lin_w_t": jnp.transpose(params["lin_w"]),                                # (H, O)
        "lin_b": params["lin_b"].reshape(1, -1),                                  # (1, O)
        "x_pre": params["x_pre"].reshape(1, H),                                   # (1, H)
    }


# ----------------------------------------------------------------------------
# Pure-JAX reference (PyTorch layout) for correctness check only.
# ----------------------------------------------------------------------------
def rnn_reference(params, input_seq, output_step, output_dim):
    x = input_seq[0]
    for lp in params["lstm"]:
        H = lp["w_hh"].shape[1]
        h = jnp.zeros((H,), jnp.float32)
        c = jnp.zeros((H,), jnp.float32)
        outs = []
        for t in range(x.shape[0]):
            gates = lp["w_ih"] @ x[t] + lp["w_hh"] @ h + lp["b_ih"] + lp["b_hh"]
            i_g = jax.nn.sigmoid(gates[0 * H:1 * H])
            f_g = jax.nn.sigmoid(gates[1 * H:2 * H])
            g_g = jnp.tanh(gates[2 * H:3 * H])
            o_g = jax.nn.sigmoid(gates[3 * H:4 * H])
            c = f_g * c + i_g * g_g
            h = o_g * jnp.tanh(c)
            outs.append(h)
        x = jnp.stack(outs)
    xt = x[-1].reshape(-1, 1)
    x = x.at[-1, :].set(params["x_pre"])
    pred = (x @ params["lin_w"].T + params["lin_b"])[-1].reshape(output_step, output_dim)
    return pred, xt


# ----------------------------------------------------------------------------
if __name__ == "__main__":
    input_dim = 4
    input_step = 8          # sequence length
    hidden_size = 32
    num_layers = 2
    output_step = 4
    output_dim = 2

    key = jax.random.PRNGKey(0)
    key, pkey, xkey = jax.random.split(key, 3)
    params = init_rnn_params(pkey, input_dim, hidden_size, num_layers,
                             output_step, output_dim)
    kparams = prepare_kernel_params(params)
    input_seq = jax.random.normal(xkey, (1, input_step, input_dim), jnp.float32)

    preds, xt = rnn_forward(kparams, input_seq,
                            output_step=output_step, output_dim=output_dim)
    jax.block_until_ready((preds, xt))

    ref_preds, ref_xt = rnn_reference(params, input_seq, output_step, output_dim)
    assert preds.shape == (output_step, output_dim)
    assert xt.shape == (hidden_size, 1)
    assert jnp.allclose(preds, ref_preds, atol=1e-5, rtol=1e-5)
    assert jnp.allclose(xt, ref_xt, atol=1e-5, rtol=1e-5)

    print("KERNEL_OK")
</pallas_src>

<mosaic_0001>
module attributes {stable_mosaic.version = 11 : i64} {
  func.func @kernel(%arg0: memref<8x4xf32, #tpu.memory_space<vmem>>, %arg1: memref<4x128xf32, #tpu.memory_space<vmem>>, %arg2: memref<32x128xf32, #tpu.memory_space<vmem>>, %arg3: memref<32x128xf32, #tpu.memory_space<vmem>>, %arg4: memref<32x128xf32, #tpu.memory_space<vmem>>, %arg5: memref<1x128xf32, #tpu.memory_space<vmem>>, %arg6: memref<1x128xf32, #tpu.memory_space<vmem>>, %arg7: memref<32x8xf32, #tpu.memory_space<vmem>>, %arg8: memref<1x8xf32, #tpu.memory_space<vmem>>, %arg9: memref<1x32xf32, #tpu.memory_space<vmem>>, %arg10: memref<1x8xf32, #tpu.memory_space<vmem>>, %arg11: memref<1x32xf32, #tpu.memory_space<vmem>>, %arg12: memref<8x32xf32, #tpu.memory_space<vmem>>, %arg13: memref<8x128xf32, #tpu.memory_space<vmem>>) attributes {dimension_semantics = [], scalar_prefetch = 0 : i64, scratch_operands = 2 : i64, tpu.core_type = #tpu.core_type<tc>} {
    %c0 = arith.constant 0 : index
    %c0_0 = arith.constant 0 : index
    %0 = vector.load %arg0[%c0, %c0_0] : memref<8x4xf32, #tpu.memory_space<vmem>>, vector<8x4xf32>
    %c0_1 = arith.constant 0 : index
    %c0_2 = arith.constant 0 : index
    %1 = vector.load %arg1[%c0_1, %c0_2] : memref<4x128xf32, #tpu.memory_space<vmem>>, vector<4x128xf32>
    %cst = arith.constant dense<0.000000e+00> : vector<8x128xf32>
    %2 = tpu.matmul %0, %1, %cst {dimension_numbers = #tpu.dot_dimension_numbers<[1], [0], [0], [1], [0, 0, 1, 1], [], []>} : vector<8x4xf32>, vector<4x128xf32>, vector<8x128xf32> -> vector<8x128xf32>
    %c0_3 = arith.constant 0 : index
    %c0_4 = arith.constant 0 : index
    %3 = vector.load %arg5[%c0_3, %c0_4] : memref<1x128xf32, #tpu.memory_space<vmem>>, vector<1x128xf32>
    %4 = vector.broadcast %3 : vector<1x128xf32> to vector<8x128xf32>
    %5 = arith.addf %2, %4 : vector<8x128xf32>
    %c0_5 = arith.constant 0 : index
    %c0_6 = arith.constant 0 : index
    %6 = vector.load %arg13[%c0_5, %c0_6] : memref<8x128xf32, #tpu.memory_space<vmem>>, vector<8x128xf32>
    tpu.vector_store %arg13[%c0_5, %c0_6], %5 {strides = array<i32>} : memref<8x128xf32, #tpu.memory_space<vmem>>, vector<8x128xf32>,
    %c0_7 = arith.constant 0 : index
    %c0_8 = arith.constant 0 : index
    %7 = vector.load %arg3[%c0_7, %c0_8] : memref<32x128xf32, #tpu.memory_space<vmem>>, vector<32x128xf32>
    %cst_9 = arith.constant 0.000000e+00 : f32
    %8 = vector.broadcast %cst_9 : f32 to vector<1x32xf32>
    %cst_10 = arith.constant 0.000000e+00 : f32
    %9 = vector.broadcast %cst_10 : f32 to vector<1x32xf32>
    %cst_11 = arith.constant dense<0.000000e+00> : vector<1x128xf32>
    %10 = tpu.matmul %8, %7, %cst_11 {dimension_numbers = #tpu.dot_dimension_numbers<[1], [0], [0], [1], [0, 0, 1, 1], [], []>} : vector<1x32xf32>, vector<32x128xf32>, vector<1x128xf32> -> vector<1x128xf32>
    %c0_12 = arith.constant 0 : index
    %c0_13 = arith.constant 0 : index
    %11 = vector.load %arg13[%c0_12, %c0_13] : memref<8x128xf32, #tpu.memory_space<vmem>>, vector<1x128xf32>
    %12 = arith.addf %10, %11 : vector<1x128xf32>
    %13 = arith.negf %12 : vector<1x128xf32>
    %14 = math.exp %13 : vector<1x128xf32>
    %cst_14 = arith.constant 1.000000e+00 : f32
    %15 = vector.broadcast %cst_14 : f32 to vector<1x128xf32>
    %16 = arith.addf %15, %14 : vector<1x128xf32>
    %17 = arith.divf %15, %16 : vector<1x128xf32>
    %18 = vector.extract_strided_slice %12 {offsets = [0, 64], sizes = [1, 32], strides = [1, 1]} : vector<1x128xf32> to vector<1x32xf32>
    %19 = math.tanh %18 : vector<1x32xf32>
    %20 = vector.extract_strided_slice %17 {offsets = [0, 0], sizes = [1, 32], strides = [1, 1]} : vector<1x128xf32> to vector<1x32xf32>
    %21 = vector.extract_strided_slice %17 {offsets = [0, 32], sizes = [1, 32], strides = [1, 1]} : vector<1x128xf32> to vector<1x32xf32>
    %22 = vector.extract_strided_slice %17 {offsets = [0, 96], sizes = [1, 32], strides = [1, 1]} : vector<1x128xf32> to vector<1x32xf32>
    %23 = arith.mulf %21, %9 : vector<1x32xf32>
    %24 = arith.mulf %20, %19 : vector<1x32xf32>
    %25 = arith.addf %23, %24 : vector<1x32xf32>
    %26 = math.tanh %25 : vector<1x32xf32>
    %27 = arith.mulf %22, %26 : vector<1x32xf32>
    %c0_15 = arith.constant 0 : index
    %c0_16 = arith.constant 0 : index
    %28 = vector.load %arg12[%c0_15, %c0_16] : memref<8x32xf32, #tpu.memory_space<vmem>>, vector<1x32xf32>
    tpu.vector_store %arg12[%c0_15, %c0_16], %27 {strides = array<i32>} : memref<8x32xf32, #tpu.memory_space<vmem>>, vector<1x32xf32>,
    %cst_17 = arith.constant dense<0.000000e+00> : vector<1x128xf32>
    %29 = tpu.matmul %27, %7, %cst_17 {dimension_numbers = #tpu.dot_dimension_numbers<[1], [0], [0], [1], [0, 0, 1, 1], [], []>} : vector<1x32xf32>, vector<32x128xf32>, vector<1x128xf32> -> vector<1x128xf32>
    %c1 = arith.constant 1 : index
    %c0_18 = arith.constant 0 : index
    %30 = vector.load %arg13[%c1, %c0_18] : memref<8x128xf32, #tpu.memory_space<vmem>>, vector<1x128xf32>
    %31 = arith.addf %29, %30 : vector<1x128xf32>
    %32 = arith.negf %31 : vector<1x128xf32>
    %33 = math.exp %32 : vector<1x128xf32>
    %cst_19 = arith.constant 1.000000e+00 : f32
    %34 = vector.broadcast %cst_19 : f32 to vector<1x128xf32>
    %35 = arith.addf %34, %33 : vector<1x128xf32>
    %36 = arith.divf %34, %35 : vector<1x128xf32>
    %37 = vector.extract_strided_slice %31 {offsets = [0, 64], sizes = [1, 32], strides = [1, 1]} : vector<1x128xf32> to vector<1x32xf32>
    %38 = math.tanh %37 : vector<1x32xf32>
    %39 = vector.extract_strided_slice %36 {offsets = [0, 0], sizes = [1, 32], strides = [1, 1]} : vector<1x128xf32> to vector<1x32xf32>
    %40 = vector.extract_strided_slice %36 {offsets = [0, 32], sizes = [1, 32], strides = [1, 1]} : vector<1x128xf32> to vector<1x32xf32>
    %41 = vector.extract_strided_slice %36 {offsets = [0, 96], sizes = [1, 32], strides = [1, 1]} : vector<1x128xf32> to vector<1x32xf32>
    %42 = arith.mulf %40, %25 : vector<1x32xf32>
    %43 = arith.mulf %39, %38 : vector<1x32xf32>
    %44 = arith.addf %42, %43 : vector<1x32xf32>
    %45 = math.tanh %44 : vector<1x32xf32>
    %46 = arith.mulf %41, %45 : vector<1x32xf32>
    %c1_20 = arith.constant 1 : index
    %c0_21 = arith.constant 0 : index
    %47 = vector.load %arg12[%c1_20, %c0_21] : memref<8x32xf32, #tpu.memory_space<vmem>>, vector<1x32xf32>
    tpu.vector_store %arg12[%c1_20, %c0_21], %46 {strides = array<i32>} : memref<8x32xf32, #tpu.memory_space<vmem>>, vector<1x32xf32>,
    %cst_22 = arith.constant dense<0.000000e+00> : vector<1x128xf32>
    %48 = tpu.matmul %46, %7, %cst_22 {dimension_numbers = #tpu.dot_dimension_numbers<[1], [0], [0], [1], [0, 0, 1, 1], [], []>} : vector<1x32xf32>, vector<32x128xf32>, vector<1x128xf32> -> vector<1x128xf32>
    %c2 = arith.constant 2 : index
    %c0_23 = arith.constant 0 : index
    %49 = vector.load %arg13[%c2, %c0_23] : memref<8x128xf32, #tpu.memory_space<vmem>>, vector<1x128xf32>
    %50 = arith.addf %48, %49 : vector<1x128xf32>
    %51 = arith.negf %50 : vector<1x128xf32>
    %52 = math.exp %51 : vector<1x128xf32>
    %cst_24 = arith.constant 1.000000e+00 : f32
    %53 = vector.broadcast %cst_24 : f32 to vector<1x128xf32>
    %54 = arith.addf %53, %52 : vector<1x128xf32>
    %55 = arith.divf %53, %54 : vector<1x128xf32>
    %56 = vector.extract_strided_slice %50 {offsets = [0, 64], sizes = [1, 32], strides = [1, 1]} : vector<1x128xf32> to vector<1x32xf32>
    %57 = math.tanh %56 : vector<1x32xf32>
    %58 = vector.extract_strided_slice %55 {offsets = [0, 0], sizes = [1, 32], strides = [1, 1]} : vector<1x128xf32> to vector<1x32xf32>
    %59 = vector.extract_strided_slice %55 {offsets = [0, 32], sizes = [1, 32], strides = [1, 1]} : vector<1x128xf32> to vector<1x32xf32>
    %60 = vector.extract_strided_slice %55 {offsets = [0, 96], sizes = [1, 32], strides = [1, 1]} : vector<1x128xf32> to vector<1x32xf32>
    %61 = arith.mulf %59, %44 : vector<1x32xf32>
    %62 = arith.mulf %58, %57 : vector<1x32xf32>
    %63 = arith.addf %61, %62 : vector<1x32xf32>
    %64 = math.tanh %63 : vector<1x32xf32>
    %65 = arith.mulf %60, %64 : vector<1x32xf32>
    %c2_25 = arith.constant 2 : index
    %c0_26 = arith.constant 0 : index
    %66 = vector.load %arg12[%c2_25, %c0_26] : memref<8x32xf32, #tpu.memory_space<vmem>>, vector<1x32xf32>
    tpu.vector_store %arg12[%c2_25, %c0_26], %65 {strides = array<i32>} : memref<8x32xf32, #tpu.memory_space<vmem>>, vector<1x32xf32>,
    %cst_27 = arith.constant dense<0.000000e+00> : vector<1x128xf32>
    %67 = tpu.matmul %65, %7, %cst_27 {dimension_numbers = #tpu.dot_dimension_numbers<[1], [0], [0], [1], [0, 0, 1, 1], [], []>} : vector<1x32xf32>, vector<32x128xf32>, vector<1x128xf32> -> vector<1x128xf32>
    %c3 = arith.constant 3 : index
    %c0_28 = arith.constant 0 : index
    %68 = vector.load %arg13[%c3, %c0_28] : memref<8x128xf32, #tpu.memory_space<vmem>>, vector<1x128xf32>
    %69 = arith.addf %67, %68 : vector<1x128xf32>
    %70 = arith.negf %69 : vector<1x128xf32>
    %71 = math.exp %70 : vector<1x128xf32>
    %cst_29 = arith.constant 1.000000e+00 : f32
    %72 = vector.broadcast %cst_29 : f32 to vector<1x128xf32>
    %73 = arith.addf %72, %71 : vector<1x128xf32>
    %74 = arith.divf %72, %73 : vector<1x128xf32>
    %75 = vector.extract_strided_slice %69 {offsets = [0, 64], sizes = [1, 32], strides = [1, 1]} : vector<1x128xf32> to vector<1x32xf32>
    %76 = math.tanh %75 : vector<1x32xf32>
    %77 = vector.extract_strided_slice %74 {offsets = [0, 0], sizes = [1, 32], strides = [1, 1]} : vector<1x128xf32> to vector<1x32xf32>
    %78 = vector.extract_strided_slice %74 {offsets = [0, 32], sizes = [1, 32], strides = [1, 1]} : vector<1x128xf32> to vector<1x32xf32>
    %79 = vector.extract_strided_slice %74 {offsets = [0, 96], sizes = [1, 32], strides = [1, 1]} : vector<1x128xf32> to vector<1x32xf32>
    %80 = arith.mulf %78, %63 : vector<1x32xf32>
    %81 = arith.mulf %77, %76 : vector<1x32xf32>
    %82 = arith.addf %80, %81 : vector<1x32xf32>
    %83 = math.tanh %82 : vector<1x32xf32>
    %84 = arith.mulf %79, %83 : vector<1x32xf32>
    %c3_30 = arith.constant 3 : index
    %c0_31 = arith.constant 0 : index
    %85 = vector.load %arg12[%c3_30, %c0_31] : memref<8x32xf32, #tpu.memory_space<vmem>>, vector<1x32xf32>
    tpu.vector_store %arg12[%c3_30, %c0_31], %84 {strides = array<i32>} : memref<8x32xf32, #tpu.memory_space<vmem>>, vector<1x32xf32>,
    %cst_32 = arith.constant dense<0.000000e+00> : vector<1x128xf32>
    %86 = tpu.matmul %84, %7, %cst_32 {dimension_numbers = #tpu.dot_dimension_numbers<[1], [0], [0], [1], [0, 0, 1, 1], [], []>} : vector<1x32xf32>, vector<32x128xf32>, vector<1x128xf32> -> vector<1x128xf32>
    %c4 = arith.constant 4 : index
    %c0_33 = arith.constant 0 : index
    %87 = vector.load %arg13[%c4, %c0_33] : memref<8x128xf32, #tpu.memory_space<vmem>>, vector<1x128xf32>
    %88 = arith.addf %86, %87 : vector<1x128xf32>
    %89 = arith.negf %88 : vector<1x128xf32>
    %90 = math.exp %89 : vector<1x128xf32>
    %cst_34 = arith.constant 1.000000e+00 : f32
    %91 = vector.broadcast %cst_34 : f32 to vector<1x128xf32>
    %92 = arith.addf %91, %90 : vector<1x128xf32>
    %93 = arith.divf %91, %92 : vector<1x128xf32>
    %94 = vector.extract_strided_slice %88 {offsets = [0, 64], sizes = [1, 32], strides = [1, 1]} : vector<1x128xf32> to vector<1x32xf32>
    %95 = math.tanh %94 : vector<1x32xf32>
    %96 = vector.extract_strided_slice %93 {offsets = [0, 0], sizes = [1, 32], strides = [1, 1]} : vector<1x128xf32> to vector<1x32xf32>
    %97 = vector.extract_strided_slice %93 {offsets = [0, 32], sizes = [1, 32], strides = [1, 1]} : vector<1x128xf32> to vector<1x32xf32>
    %98 = vector.extract_strided_slice %93 {offsets = [0, 96], sizes = [1, 32], strides = [1, 1]} : vector<1x128xf32> to vector<1x32xf32>
    %99 = arith.mulf %97, %82 : vector<1x32xf32>
    %100 = arith.mulf %96, %95 : vector<1x32xf32>
    %101 = arith.addf %99, %100 : vector<1x32xf32>
    %102 = math.tanh %101 : vector<1x32xf32>
    %103 = arith.mulf %98, %102 : vector<1x32xf32>
    %c4_35 = arith.constant 4 : index
    %c0_36 = arith.constant 0 : index
    %104 = vector.load %arg12[%c4_35, %c0_36] : memref<8x32xf32, #tpu.memory_space<vmem>>, vector<1x32xf32>
    tpu.vector_store %arg12[%c4_35, %c0_36], %103 {strides = array<i32>} : memref<8x32xf32, #tpu.memory_space<vmem>>, vector<1x32xf32>,
    %cst_37 = arith.constant dense<0.000000e+00> : vector<1x128xf32>
    %105 = tpu.matmul %103, %7, %cst_37 {dimension_numbers = #tpu.dot_dimension_numbers<[1], [0], [0], [1], [0, 0, 1, 1], [], []>} : vector<1x32xf32>, vector<32x128xf32>, vector<1x128xf32> -> vector<1x128xf32>
    %c5 = arith.constant 5 : index
    %c0_38 = arith.constant 0 : index
    %106 = vector.load %arg13[%c5, %c0_38] : memref<8x128xf32, #tpu.memory_space<vmem>>, vector<1x128xf32>
    %107 = arith.addf %105, %106 : vector<1x128xf32>
    %108 = arith.negf %107 : vector<1x128xf32>
    %109 = math.exp %108 : vector<1x128xf32>
    %cst_39 = arith.constant 1.000000e+00 : f32
    %110 = vector.broadcast %cst_39 : f32 to vector<1x128xf32>
    %111 = arith.addf %110, %109 : vector<1x128xf32>
    %112 = arith.divf %110, %111 : vector<1x128xf32>
    %113 = vector.extract_strided_slice %107 {offsets = [0, 64], sizes = [1, 32], strides = [1, 1]} : vector<1x128xf32> to vector<1x32xf32>
    %114 = math.tanh %113 : vector<1x32xf32>
    %115 = vector.extract_strided_slice %112 {offsets = [0, 0], sizes = [1, 32], strides = [1, 1]} : vector<1x128xf32> to vector<1x32xf32>
    %116 = vector.extract_strided_slice %112 {offsets = [0, 32], sizes = [1, 32], strides = [1, 1]} : vector<1x128xf32> to vector<1x32xf32>
    %117 = vector.extract_strided_slice %112 {offsets = [0, 96], sizes = [1, 32], strides = [1, 1]} : vector<1x128xf32> to vector<1x32xf32>
    %118 = arith.mulf %116, %101 : vector<1x32xf32>
    %119 = arith.mulf %115, %114 : vector<1x32xf32>
    %120 = arith.addf %118, %119 : vector<1x32xf32>
    %121 = math.tanh %120 : vector<1x32xf32>
    %122 = arith.mulf %117, %121 : vector<1x32xf32>
    %c5_40 = arith.constant 5 : index
    %c0_41 = arith.constant 0 : index
    %123 = vector.load %arg12[%c5_40, %c0_41] : memref<8x32xf32, #tpu.memory_space<vmem>>, vector<1x32xf32>
    tpu.vector_store %arg12[%c5_40, %c0_41], %122 {strides = array<i32>} : memref<8x32xf32, #tpu.memory_space<vmem>>, vector<1x32xf32>,
    %cst_42 = arith.constant dense<0.000000e+00> : vector<1x128xf32>
    %124 = tpu.matmul %122, %7, %cst_42 {dimension_numbers = #tpu.dot_dimension_numbers<[1], [0], [0], [1], [0, 0, 1, 1], [], []>} : vector<1x32xf32>, vector<32x128xf32>, vector<1x128xf32> -> vector<1x128xf32>
    %c6 = arith.constant 6 : index
    %c0_43 = arith.constant 0 : index
    %125 = vector.load %arg13[%c6, %c0_43] : memref<8x128xf32, #tpu.memory_space<vmem>>, vector<1x128xf32>
    %126 = arith.addf %124, %125 : vector<1x128xf32>
    %127 = arith.negf %126 : vector<1x128xf32>
    %128 = math.exp %127 : vector<1x128xf32>
    %cst_44 = arith.constant 1.000000e+00 : f32
    %129 = vector.broadcast %cst_44 : f32 to vector<1x128xf32>
    %130 = arith.addf %129, %128 : vector<1x128xf32>
    %131 = arith.divf %129, %130 : vector<1x128xf32>
    %132 = vector.extract_strided_slice %126 {offsets = [0, 64], sizes = [1, 32], strides = [1, 1]} : vector<1x128xf32> to vector<1x32xf32>
    %133 = math.tanh %132 : vector<1x32xf32>
    %134 = vector.extract_strided_slice %131 {offsets = [0, 0], sizes = [1, 32], strides = [1, 1]} : vector<1x128xf32> to vector<1x32xf32>
    %135 = vector.extract_strided_slice %131 {offsets = [0, 32], sizes = [1, 32], strides = [1, 1]} : vector<1x128xf32> to vector<1x32xf32>
    %136 = vector.extract_strided_slice %131 {offsets = [0, 96], sizes = [1, 32], strides = [1, 1]} : vector<1x128xf32> to vector<1x32xf32>
    %137 = arith.mulf %135, %120 : vector<1x32xf32>
    %138 = arith.mulf %134, %133 : vector<1x32xf32>
    %139 = arith.addf %137, %138 : vector<1x32xf32>
    %140 = math.tanh %139 : vector<1x32xf32>
    %141 = arith.mulf %136, %140 : vector<1x32xf32>
    %c6_45 = arith.constant 6 : index
    %c0_46 = arith.constant 0 : index
    %142 = vector.load %arg12[%c6_45, %c0_46] : memref<8x32xf32, #tpu.memory_space<vmem>>, vector<1x32xf32>
    tpu.vector_store %arg12[%c6_45, %c0_46], %141 {strides = array<i32>} : memref<8x32xf32, #tpu.memory_space<vmem>>, vector<1x32xf32>,
    %cst_47 = arith.constant dense<0.000000e+00> : vector<1x128xf32>
    %143 = tpu.matmul %141, %7, %cst_47 {dimension_numbers = #tpu.dot_dimension_numbers<[1], [0], [0], [1], [0, 0, 1, 1], [], []>} : vector<1x32xf32>, vector<32x128xf32>, vector<1x128xf32> -> vector<1x128xf32>
    %c7 = arith.constant 7 : index
    %c0_48 = arith.constant 0 : index
    %144 = vector.load %arg13[%c7, %c0_48] : memref<8x128xf32, #tpu.memory_space<vmem>>, vector<1x128xf32>
    %145 = arith.addf %143, %144 : vector<1x128xf32>
    %146 = arith.negf %145 : vector<1x128xf32>
    %147 = math.exp %146 : vector<1x128xf32>
    %cst_49 = arith.constant 1.000000e+00 : f32
    %148 = vector.broadcast %cst_49 : f32 to vector<1x128xf32>
    %149 = arith.addf %148, %147 : vector<1x128xf32>
    %150 = arith.divf %148, %149 : vector<1x128xf32>
    %151 = vector.extract_strided_slice %145 {offsets = [0, 64], sizes = [1, 32], strides = [1, 1]} : vector<1x128xf32> to vector<1x32xf32>
    %152 = math.tanh %151 : vector<1x32xf32>
    %153 = vector.extract_strided_slice %150 {offsets = [0, 0], sizes = [1, 32], strides = [1, 1]} : vector<1x128xf32> to vector<1x32xf32>
    %154 = vector.extract_strided_slice %150 {offsets = [0, 32], sizes = [1, 32], strides = [1, 1]} : vector<1x128xf32> to vector<1x32xf32>
    %155 = vector.extract_strided_slice %150 {offsets = [0, 96], sizes = [1, 32], strides = [1, 1]} : vector<1x128xf32> to vector<1x32xf32>
    %156 = arith.mulf %154, %139 : vector<1x32xf32>
    %157 = arith.mulf %153, %152 : vector<1x32xf32>
    %158 = arith.addf %156, %157 : vector<1x32xf32>
    %159 = math.tanh %158 : vector<1x32xf32>
    %160 = arith.mulf %155, %159 : vector<1x32xf32>
    %c7_50 = arith.constant 7 : index
    %c0_51 = arith.constant 0 : index
    %161 = vector.load %arg12[%c7_50, %c0_51] : memref<8x32xf32, #tpu.memory_space<vmem>>, vector<1x32xf32>
    tpu.vector_store %arg12[%c7_50, %c0_51], %160 {strides = array<i32>} : memref<8x32xf32, #tpu.memory_space<vmem>>, vector<1x32xf32>,
    %c0_52 = arith.constant 0 : index
    %c0_53 = arith.constant 0 : index
    %162 = vector.load %arg12[%c0_52, %c0_53] : memref<8x32xf32, #tpu.memory_space<vmem>>, vector<8x32xf32>
    %c0_54 = arith.constant 0 : index
    %c0_55 = arith.constant 0 : index
    %163 = vector.load %arg2[%c0_54, %c0_55] : memref<32x128xf32, #tpu.memory_space<vmem>>, vector<32x128xf32>
    %cst_56 = arith.constant dense<0.000000e+00> : vector<8x128xf32>
    %164 = tpu.matmul %162, %163, %cst_56 {dimension_numbers = #tpu.dot_dimension_numbers<[1], [0], [0], [1], [0, 0, 1, 1], [], []>} : vector<8x32xf32>, vector<32x128xf32>, vector<8x128xf32> -> vector<8x128xf32>
    %c0_57 = arith.constant 0 : index
    %c0_58 = arith.constant 0 : index
    %165 = vector.load %arg6[%c0_57, %c0_58] : memref<1x128xf32, #tpu.memory_space<vmem>>, vector<1x128xf32>
    %166 = vector.broadcast %165 : vector<1x128xf32> to vector<8x128xf32>
    %167 = arith.addf %164, %166 : vector<8x128xf32>
    %c0_59 = arith.constant 0 : index
    %c0_60 = arith.constant 0 : index
    %168 = vector.load %arg13[%c0_59, %c0_60] : memref<8x128xf32, #tpu.memory_space<vmem>>, vector<8x128xf32>
    tpu.vector_store %arg13[%c0_59, %c0_60], %167 {strides = array<i32>} : memref<8x128xf32, #tpu.memory_space<vmem>>, vector<8x128xf32>,
    %c0_61 = arith.constant 0 : index
    %c0_62 = arith.constant 0 : index
    %169 = vector.load %arg4[%c0_61, %c0_62] : memref<32x128xf32, #tpu.memory_space<vmem>>, vector<32x128xf32>
    %cst_63 = arith.constant 0.000000e+00 : f32
    %170 = vector.broadcast %cst_63 : f32 to vector<1x32xf32>
    %cst_64 = arith.constant 0.000000e+00 : f32
    %171 = vector.broadcast %cst_64 : f32 to vector<1x32xf32>
    %cst_65 = arith.constant dense<0.000000e+00> : vector<1x128xf32>
    %172 = tpu.matmul %170, %169, %cst_65 {dimension_numbers = #tpu.dot_dimension_numbers<[1], [0], [0], [1], [0, 0, 1, 1], [], []>} : vector<1x32xf32>, vector<32x128xf32>, vector<1x128xf32> -> vector<1x128xf32>
    %c0_66 = arith.constant 0 : index
    %c0_67 = arith.constant 0 : index
    %173 = vector.load %arg13[%c0_66, %c0_67] : memref<8x128xf32, #tpu.memory_space<vmem>>, vector<1x128xf32>
    %174 = arith.addf %172, %173 : vector<1x128xf32>
    %175 = arith.negf %174 : vector<1x128xf32>
    %176 = math.exp %175 : vector<1x128xf32>
    %cst_68 = arith.constant 1.000000e+00 : f32
    %177 = vector.broadcast %cst_68 : f32 to vector<1x128xf32>
    %178 = arith.addf %177, %176 : vector<1x128xf32>
    %179 = arith.divf %177, %178 : vector<1x128xf32>
    %180 = vector.extract_strided_slice %174 {offsets = [0, 64], sizes = [1, 32], strides = [1, 1]} : vector<1x128xf32> to vector<1x32xf32>
    %181 = math.tanh %180 : vector<1x32xf32>
    %182 = vector.extract_strided_slice %179 {offsets = [0, 0], sizes = [1, 32], strides = [1, 1]} : vector<1x128xf32> to vector<1x32xf32>
    %183 = vector.extract_strided_slice %179 {offsets = [0, 32], sizes = [1, 32], strides = [1, 1]} : vector<1x128xf32> to vector<1x32xf32>
    %184 = vector.extract_strided_slice %179 {offsets = [0, 96], sizes = [1, 32], strides = [1, 1]} : vector<1x128xf32> to vector<1x32xf32>
    %185 = arith.mulf %183, %171 : vector<1x32xf32>
    %186 = arith.mulf %182, %181 : vector<1x32xf32>
    %187 = arith.addf %185, %186 : vector<1x32xf32>
    %188 = math.tanh %187 : vector<1x32xf32>
    %189 = arith.mulf %184, %188 : vector<1x32xf32>
    %cst_69 = arith.constant dense<0.000000e+00> : vector<1x128xf32>
    %190 = tpu.matmul %189, %169, %cst_69 {dimension_numbers = #tpu.dot_dimension_numbers<[1], [0], [0], [1], [0, 0, 1, 1], [], []>} : vector<1x32xf32>, vector<32x128xf32>, vector<1x128xf32> -> vector<1x128xf32>
    %c1_70 = arith.constant 1 : index
    %c0_71 = arith.constant 0 : index
    %191 = vector.load %arg13[%c1_70, %c0_71] : memref<8x128xf32, #tpu.memory_space<vmem>>, vector<1x128xf32>
    %192 = arith.addf %190, %191 : vector<1x128xf32>
    %193 = arith.negf %192 : vector<1x128xf32>
    %194 = math.exp %193 : vector<1x128xf32>
    %cst_72 = arith.constant 1.000000e+00 : f32
    %195 = vector.broadcast %cst_72 : f32 to vector<1x128xf32>
    %196 = arith.addf %195, %194 : vector<1x128xf32>
    %197 = arith.divf %195, %196 : vector<1x128xf32>
    %198 = vector.extract_strided_slice %192 {offsets = [0, 64], sizes = [1, 32], strides = [1, 1]} : vector<1x128xf32> to vector<1x32xf32>
    %199 = math.tanh %198 : vector<1x32xf32>
    %200 = vector.extract_strided_slice %197 {offsets = [0, 0], sizes = [1, 32], strides = [1, 1]} : vector<1x128xf32> to vector<1x32xf32>
    %201 = vector.extract_strided_slice %197 {offsets = [0, 32], sizes = [1, 32], strides = [1, 1]} : vector<1x128xf32> to vector<1x32xf32>
    %202 = vector.extract_strided_slice %197 {offsets = [0, 96], sizes = [1, 32], strides = [1, 1]} : vector<1x128xf32> to vector<1x32xf32>
    %203 = arith.mulf %201, %187 : vector<1x32xf32>
    %204 = arith.mulf %200, %199 : vector<1x32xf32>
    %205 = arith.addf %203, %204 : vector<1x32xf32>
    %206 = math.tanh %205 : vector<1x32xf32>
    %207 = arith.mulf %202, %206 : vector<1x32xf32>
    %cst_73 = arith.constant dense<0.000000e+00> : vector<1x128xf32>
    %208 = tpu.matmul %207, %169, %cst_73 {dimension_numbers = #tpu.dot_dimension_numbers<[1], [0], [0], [1], [0, 0, 1, 1], [], []>} : vector<1x32xf32>, vector<32x128xf32>, vector<1x128xf32> -> vector<1x128xf32>
    %c2_74 = arith.constant 2 : index
    %c0_75 = arith.constant 0 : index
    %209 = vector.load %arg13[%c2_74, %c0_75] : memref<8x128xf32, #tpu.memory_space<vmem>>, vector<1x128xf32>
    %210 = arith.addf %208, %209 : vector<1x128xf32>
    %211 = arith.negf %210 : vector<1x128xf32>
    %212 = math.exp %211 : vector<1x128xf32>
    %cst_76 = arith.constant 1.000000e+00 : f32
    %213 = vector.broadcast %cst_76 : f32 to vector<1x128xf32>
    %214 = arith.addf %213, %212 : vector<1x128xf32>
    %215 = arith.divf %213, %214 : vector<1x128xf32>
    %216 = vector.extract_strided_slice %210 {offsets = [0, 64], sizes = [1, 32], strides = [1, 1]} : vector<1x128xf32> to vector<1x32xf32>
    %217 = math.tanh %216 : vector<1x32xf32>
    %218 = vector.extract_strided_slice %215 {offsets = [0, 0], sizes = [1, 32], strides = [1, 1]} : vector<1x128xf32> to vector<1x32xf32>
    %219 = vector.extract_strided_slice %215 {offsets = [0, 32], sizes = [1, 32], strides = [1, 1]} : vector<1x128xf32> to vector<1x32xf32>
    %220 = vector.extract_strided_slice %215 {offsets = [0, 96], sizes = [1, 32], strides = [1, 1]} : vector<1x128xf32> to vector<1x32xf32>
    %221 = arith.mulf %219, %205 : vector<1x32xf32>
    %222 = arith.mulf %218, %217 : vector<1x32xf32>
    %223 = arith.addf %221, %222 : vector<1x32xf32>
    %224 = math.tanh %223 : vector<1x32xf32>
    %225 = arith.mulf %220, %224 : vector<1x32xf32>
    %cst_77 = arith.constant dense<0.000000e+00> : vector<1x128xf32>
    %226 = tpu.matmul %225, %169, %cst_77 {dimension_numbers = #tpu.dot_dimension_numbers<[1], [0], [0], [1], [0, 0, 1, 1], [], []>} : vector<1x32xf32>, vector<32x128xf32>, vector<1x128xf32> -> vector<1x128xf32>
    %c3_78 = arith.constant 3 : index
    %c0_79 = arith.constant 0 : index
    %227 = vector.load %arg13[%c3_78, %c0_79] : memref<8x128xf32, #tpu.memory_space<vmem>>, vector<1x128xf32>
    %228 = arith.addf %226, %227 : vector<1x128xf32>
    %229 = arith.negf %228 : vector<1x128xf32>
    %230 = math.exp %229 : vector<1x128xf32>
    %cst_80 = arith.constant 1.000000e+00 : f32
    %231 = vector.broadcast %cst_80 : f32 to vector<1x128xf32>
    %232 = arith.addf %231, %230 : vector<1x128xf32>
    %233 = arith.divf %231, %232 : vector<1x128xf32>
    %234 = vector.extract_strided_slice %228 {offsets = [0, 64], sizes = [1, 32], strides = [1, 1]} : vector<1x128xf32> to vector<1x32xf32>
    %235 = math.tanh %234 : vector<1x32xf32>
    %236 = vector.extract_strided_slice %233 {offsets = [0, 0], sizes = [1, 32], strides = [1, 1]} : vector<1x128xf32> to vector<1x32xf32>
    %237 = vector.extract_strided_slice %233 {offsets = [0, 32], sizes = [1, 32], strides = [1, 1]} : vector<1x128xf32> to vector<1x32xf32>
    %238 = vector.extract_strided_slice %233 {offsets = [0, 96], sizes = [1, 32], strides = [1, 1]} : vector<1x128xf32> to vector<1x32xf32>
    %239 = arith.mulf %237, %223 : vector<1x32xf32>
    %240 = arith.mulf %236, %235 : vector<1x32xf32>
    %241 = arith.addf %239, %240 : vector<1x32xf32>
    %242 = math.tanh %241 : vector<1x32xf32>
    %243 = arith.mulf %238, %242 : vector<1x32xf32>
    %cst_81 = arith.constant dense<0.000000e+00> : vector<1x128xf32>
    %244 = tpu.matmul %243, %169, %cst_81 {dimension_numbers = #tpu.dot_dimension_numbers<[1], [0], [0], [1], [0, 0, 1, 1], [], []>} : vector<1x32xf32>, vector<32x128xf32>, vector<1x128xf32> -> vector<1x128xf32>
    %c4_82 = arith.constant 4 : index
    %c0_83 = arith.constant 0 : index
    %245 = vector.load %arg13[%c4_82, %c0_83] : memref<8x128xf32, #tpu.memory_space<vmem>>, vector<1x128xf32>
    %246 = arith.addf %244, %245 : vector<1x128xf32>
    %247 = arith.negf %246 : vector<1x128xf32>
    %248 = math.exp %247 : vector<1x128xf32>
    %cst_84 = arith.constant 1.000000e+00 : f32
    %249 = vector.broadcast %cst_84 : f32 to vector<1x128xf32>
    %250 = arith.addf %249, %248 : vector<1x128xf32>
    %251 = arith.divf %249, %250 : vector<1x128xf32>
    %252 = vector.extract_strided_slice %246 {offsets = [0, 64], sizes = [1, 32], strides = [1, 1]} : vector<1x128xf32> to vector<1x32xf32>
    %253 = math.tanh %252 : vector<1x32xf32>
    %254 = vector.extract_strided_slice %251 {offsets = [0, 0], sizes = [1, 32], strides = [1, 1]} : vector<1x128xf32> to vector<1x32xf32>
    %255 = vector.extract_strided_slice %251 {offsets = [0, 32], sizes = [1, 32], strides = [1, 1]} : vector<1x128xf32> to vector<1x32xf32>
    %256 = vector.extract_strided_slice %251 {offsets = [0, 96], sizes = [1, 32], strides = [1, 1]} : vector<1x128xf32> to vector<1x32xf32>
    %257 = arith.mulf %255, %241 : vector<1x32xf32>
    %258 = arith.mulf %254, %253 : vector<1x32xf32>
    %259 = arith.addf %257, %258 : vector<1x32xf32>
    %260 = math.tanh %259 : vector<1x32xf32>
    %261 = arith.mulf %256, %260 : vector<1x32xf32>
    %cst_85 = arith.constant dense<0.000000e+00> : vector<1x128xf32>
    %262 = tpu.matmul %261, %169, %cst_85 {dimension_numbers = #tpu.dot_dimension_numbers<[1], [0], [0], [1], [0, 0, 1, 1], [], []>} : vector<1x32xf32>, vector<32x128xf32>, vector<1x128xf32> -> vector<1x128xf32>
    %c5_86 = arith.constant 5 : index
    %c0_87 = arith.constant 0 : index
    %263 = vector.load %arg13[%c5_86, %c0_87] : memref<8x128xf32, #tpu.memory_space<vmem>>, vector<1x128xf32>
    %264 = arith.addf %262, %263 : vector<1x128xf32>
    %265 = arith.negf %264 : vector<1x128xf32>
    %266 = math.exp %265 : vector<1x128xf32>
    %cst_88 = arith.constant 1.000000e+00 : f32
    %267 = vector.broadcast %cst_88 : f32 to vector<1x128xf32>
    %268 = arith.addf %267, %266 : vector<1x128xf32>
    %269 = arith.divf %267, %268 : vector<1x128xf32>
    %270 = vector.extract_strided_slice %264 {offsets = [0, 64], sizes = [1, 32], strides = [1, 1]} : vector<1x128xf32> to vector<1x32xf32>
    %271 = math.tanh %270 : vector<1x32xf32>
    %272 = vector.extract_strided_slice %269 {offsets = [0, 0], sizes = [1, 32], strides = [1, 1]} : vector<1x128xf32> to vector<1x32xf32>
    %273 = vector.extract_strided_slice %269 {offsets = [0, 32], sizes = [1, 32], strides = [1, 1]} : vector<1x128xf32> to vector<1x32xf32>
    %274 = vector.extract_strided_slice %269 {offsets = [0, 96], sizes = [1, 32], strides = [1, 1]} : vector<1x128xf32> to vector<1x32xf32>
    %275 = arith.mulf %273, %259 : vector<1x32xf32>
    %276 = arith.mulf %272, %271 : vector<1x32xf32>
    %277 = arith.addf %275, %276 : vector<1x32xf32>
    %278 = math.tanh %277 : vector<1x32xf32>
    %279 = arith.mulf %274, %278 : vector<1x32xf32>
    %cst_89 = arith.constant dense<0.000000e+00> : vector<1x128xf32>
    %280 = tpu.matmul %279, %169, %cst_89 {dimension_numbers = #tpu.dot_dimension_numbers<[1], [0], [0], [1], [0, 0, 1, 1], [], []>} : vector<1x32xf32>, vector<32x128xf32>, vector<1x128xf32> -> vector<1x128xf32>
    %c6_90 = arith.constant 6 : index
    %c0_91 = arith.constant 0 : index
    %281 = vector.load %arg13[%c6_90, %c0_91] : memref<8x128xf32, #tpu.memory_space<vmem>>, vector<1x128xf32>
    %282 = arith.addf %280, %281 : vector<1x128xf32>
    %283 = arith.negf %282 : vector<1x128xf32>
    %284 = math.exp %283 : vector<1x128xf32>
    %cst_92 = arith.constant 1.000000e+00 : f32
    %285 = vector.broadcast %cst_92 : f32 to vector<1x128xf32>
    %286 = arith.addf %285, %284 : vector<1x128xf32>
    %287 = arith.divf %285, %286 : vector<1x128xf32>
    %288 = vector.extract_strided_slice %282 {offsets = [0, 64], sizes = [1, 32], strides = [1, 1]} : vector<1x128xf32> to vector<1x32xf32>
    %289 = math.tanh %288 : vector<1x32xf32>
    %290 = vector.extract_strided_slice %287 {offsets = [0, 0], sizes = [1, 32], strides = [1, 1]} : vector<1x128xf32> to vector<1x32xf32>
    %291 = vector.extract_strided_slice %287 {offsets = [0, 32], sizes = [1, 32], strides = [1, 1]} : vector<1x128xf32> to vector<1x32xf32>
    %292 = vector.extract_strided_slice %287 {offsets = [0, 96], sizes = [1, 32], strides = [1, 1]} : vector<1x128xf32> to vector<1x32xf32>
    %293 = arith.mulf %291, %277 : vector<1x32xf32>
    %294 = arith.mulf %290, %289 : vector<1x32xf32>
    %295 = arith.addf %293, %294 : vector<1x32xf32>
    %296 = math.tanh %295 : vector<1x32xf32>
    %297 = arith.mulf %292, %296 : vector<1x32xf32>
    %cst_93 = arith.constant dense<0.000000e+00> : vector<1x128xf32>
    %298 = tpu.matmul %297, %169, %cst_93 {dimension_numbers = #tpu.dot_dimension_numbers<[1], [0], [0], [1], [0, 0, 1, 1], [], []>} : vector<1x32xf32>, vector<32x128xf32>, vector<1x128xf32> -> vector<1x128xf32>
    %c7_94 = arith.constant 7 : index
    %c0_95 = arith.constant 0 : index
    %299 = vector.load %arg13[%c7_94, %c0_95] : memref<8x128xf32, #tpu.memory_space<vmem>>, vector<1x128xf32>
    %300 = arith.addf %298, %299 : vector<1x128xf32>
    %301 = arith.negf %300 : vector<1x128xf32>
    %302 = math.exp %301 : vector<1x128xf32>
    %cst_96 = arith.constant 1.000000e+00 : f32
    %303 = vector.broadcast %cst_96 : f32 to vector<1x128xf32>
    %304 = arith.addf %303, %302 : vector<1x128xf32>
    %305 = arith.divf %303, %304 : vector<1x128xf32>
    %306 = vector.extract_strided_slice %300 {offsets = [0, 64], sizes = [1, 32], strides = [1, 1]} : vector<1x128xf32> to vector<1x32xf32>
    %307 = math.tanh %306 : vector<1x32xf32>
    %308 = vector.extract_strided_slice %305 {offsets = [0, 0], sizes = [1, 32], strides = [1, 1]} : vector<1x128xf32> to vector<1x32xf32>
    %309 = vector.extract_strided_slice %305 {offsets = [0, 32], sizes = [1, 32], strides = [1, 1]} : vector<1x128xf32> to vector<1x32xf32>
    %310 = vector.extract_strided_slice %305 {offsets = [0, 96], sizes = [1, 32], strides = [1, 1]} : vector<1x128xf32> to vector<1x32xf32>
    %311 = arith.mulf %309, %295 : vector<1x32xf32>
    %312 = arith.mulf %308, %307 : vector<1x32xf32>
    %313 = arith.addf %311, %312 : vector<1x32xf32>
    %314 = math.tanh %313 : vector<1x32xf32>
    %315 = arith.mulf %310, %314 : vector<1x32xf32>
    %c0_97 = arith.constant 0 : index
    %c0_98 = arith.constant 0 : index
    %316 = vector.load %arg11[%c0_97, %c0_98] : memref<1x32xf32, #tpu.memory_space<vmem>>, vector<1x32xf32>
    tpu.vector_store %arg11[%c0_97, %c0_98], %315 {strides = array<i32>} : memref<1x32xf32, #tpu.memory_space<vmem>>, vector<1x32xf32>,
    %c0_99 = arith.constant 0 : index
    %c0_100 = arith.constant 0 : index
    %317 = vector.load %arg9[%c0_99, %c0_100] : memref<1x32xf32, #tpu.memory_space<vmem>>, vector<1x32xf32>
    %c0_101 = arith.constant 0 : index
    %c0_102 = arith.constant 0 : index
    %318 = vector.load %arg7[%c0_101, %c0_102] : memref<32x8xf32, #tpu.memory_space<vmem>>, vector<32x8xf32>
    %cst_103 = arith.constant dense<0.000000e+00> : vector<1x8xf32>
    %319 = tpu.matmul %317, %318, %cst_103 {dimension_numbers = #tpu.dot_dimension_numbers<[1], [0], [0], [1], [0, 0, 1, 1], [], []>} : vector<1x32xf32>, vector<32x8xf32>, vector<1x8xf32> -> vector<1x8xf32>
    %c0_104 = arith.constant 0 : index
    %c0_105 = arith.constant 0 : index
    %320 = vector.load %arg8[%c0_104, %c0_105] : memref<1x8xf32, #tpu.memory_space<vmem>>, vector<1x8xf32>
    %321 = arith.addf %319, %320 : vector<1x8xf32>
    %c0_106 = arith.constant 0 : index
    %c0_107 = arith.constant 0 : index
    %322 = vector.load %arg10[%c0_106, %c0_107] : memref<1x8xf32, #tpu.memory_space<vmem>>, vector<1x8xf32>
    tpu.vector_store %arg10[%c0_106, %c0_107], %321 {strides = array<i32>} : memref<1x8xf32, #tpu.memory_space<vmem>>, vector<1x8xf32>,
    return
  }
}

</mosaic_0001>

<llo_original>
// kernel: rnn_forward.1
$region0: #{rnn_forward.1}
  #allocation0 [shape = 'u32[]', space=smem, size = 0x4, offset = 0x4, fixed_abs, tag = 'smem constant byte address 0x4 - core index']
  #allocation1 [shape = 'u32[144,128]{1,0:T(1,128)}', space=vmem, size = 0x12000, scoped, tag = 'internal scratch']
  #allocation2 [shape = 'f32[8,32]{1,0:T(8,128)}', space=vmem, size = 0x1000, scoped, tag = 'scratch operand']
  #allocation3 [shape = 'f32[8,128]{1,0:T(8,128)}', space=vmem, size = 0x1000, scoped, tag = 'scratch operand']
  %s0 = inlined_call_operand.vmem [shape: f32[8,4], index: 0, kind: input, shape index: {}]
  %s1 = inlined_call_operand.hbm [shape: f32[4,128], index: 1, kind: input, shape index: {}]
  %s2 = inlined_call_operand.vmem [shape: f32[32,128], index: 2, kind: input, shape index: {}]
  %s3 = inlined_call_operand.vmem [shape: f32[32,128], index: 3, kind: input, shape index: {}]
  %s4 = inlined_call_operand.hbm [shape: f32[32,128], index: 4, kind: input, shape index: {}]
  %s5 = inlined_call_operand.vmem [shape: f32[1,128], index: 5, kind: input, shape index: {}]
  %s6 = inlined_call_operand.vmem [shape: f32[1,128], index: 6, kind: input, shape index: {}]
  %s7 = inlined_call_operand.vmem [shape: f32[32,8], index: 7, kind: input, shape index: {}]
  %s8 = inlined_call_operand.hbm [shape: f32[1,8], index: 8, kind: input, shape index: {}]
  %s9 = inlined_call_operand.hbm [shape: f32[1,32], index: 9, kind: input, shape index: {}]
  %s10 = inlined_call_operand.vmem [shape: f32[1,8], index: 10, kind: output, shape index: {0}]
  %s11 = inlined_call_operand.hbm [shape: f32[1,32], index: 11, kind: output, shape index: {1}]
  %12 = xla_tuple %s10, %s11
  %s13 = sld [smem:[#allocation0]]
  $region74: #{rnn_forward.1} parent=0
    _
  %s15 = ssub.s32 1, %s13
  %s16 = scalar_select 0, %s15, %s13
  $region1: #{rnn_forward.1} parent=0
    #allocation4 [shape = 'u8[2048]{0}', space=vmem, size = 0x800, scoped, tag = 'input window, operand 1, single buffered']
    #allocation5 [shape = 's32[1]{0}', space=sflag, size = 0x4, scoped, tag = 'scoped memory for rnn_forward.1']
    #allocation6 [shape = 's32[1]{0}', space=sflag, size = 0x4, scoped, tag = 'scoped memory for rnn_forward.1']
    #allocation7 [shape = 'u8[16384]{0}', space=vmem, size = 0x4000, scoped, tag = 'input window, operand 4, single buffered']
    #allocation8 [shape = 's32[1]{0}', space=sflag, size = 0x4, scoped, tag = 'scoped memory for rnn_forward.1']
    #allocation9 [shape = 'u8[512]{0}', space=vmem, size = 0x400, scoped, tag = 'input window, operand 8, single buffered']
    #allocation10 [shape = 'u8[512]{0}', space=vmem, size = 0x400, scoped, tag = 'input window, operand 9, single buffered']
    #allocation11 [shape = 's32[1]{0}', space=sflag, size = 0x4, scoped, tag = 'scoped memory for rnn_forward.1']
    #allocation12 [shape = 'u8[512]{0}', space=vmem, size = 0x400, scoped, tag = 'output window, operand 1, single buffered']
    %17 = vsyncpa [#allocation5], 0
    %18 = vsyncpa [#allocation8], 0
    %19 = vsyncpa [#allocation11], 0
    %20 = vsyncpa [#allocation6], 0
    // Predicated region
    $region2: #{rnn_forward.1} parent=1 // pred_check
      _
    $region3: #{rnn_forward.1} parent=1 // pred_check_branch
      %22 = sbr.rel (0) target = $region5
    $region4: #{rnn_forward.1} parent=1 // pred_region
      _
    $region5: #{rnn_forward.1} parent=1 // pred_fallthru
      _
    // Predicated region
    $region6: #{rnn_forward.1} parent=1 // pred_check
      _
    $region7: #{rnn_forward.1} parent=1 // pred_check_branch
      %24 = sbr.rel (0) target = $region9
    $region8: #{rnn_forward.1} parent=1 // pred_region
      %s26 = ssub.s32 64, 64
      %27 = vsyncadd [#allocation5], %s26
      %s29 = sshll.u32 [#allocation4], 4
      %s30 = int_to_ptr.vmem [resolvable:$true] %s29
      %32 = dma.hbm_to_vmem [thread:$0]  %s1, 64, %s30, [#allocation5]
    $region9: #{rnn_forward.1} parent=1 // pred_fallthru
      _
    // Predicated region
    $region10: #{rnn_forward.1} parent=1 // pred_check
      _
    $region11: #{rnn_forward.1} parent=1 // pred_check_branch
      %34 = sbr.rel (0) target = $region13
    $region12: #{rnn_forward.1} parent=1 // pred_region
      _
    $region13: #{rnn_forward.1} parent=1 // pred_fallthru
      _
    // Predicated region
    $region14: #{rnn_forward.1} parent=1 // pred_check
      _
    $region15: #{rnn_forward.1} parent=1 // pred_check_branch
      %36 = sbr.rel (0) target = $region17
    $region16: #{rnn_forward.1} parent=1 // pred_region
      _
    $region17: #{rnn_forward.1} parent=1 // pred_fallthru
      _
    // Predicated region
    $region18: #{rnn_forward.1} parent=1 // pred_check
      _
    $region19: #{rnn_forward.1} parent=1 // pred_check_branch
      %38 = sbr.rel (0) target = $region21
    $region20: #{rnn_forward.1} parent=1 // pred_region
      %s40 = ssub.s32 512, 512
      %41 = vsyncadd [#allocation8], %s40
      %s42 = sshll.u32 [#allocation7], 4
      %s43 = int_to_ptr.vmem [resolvable:$true] %s42
      %48 = dma.hbm_to_vmem [thread:$0]  %s4, 512, %s43, [#allocation8], 128, 128, 8
    $region21: #{rnn_forward.1} parent=1 // pred_fallthru
      _
    // Predicated region
    $region22: #{rnn_forward.1} parent=1 // pred_check
      _
    $region23: #{rnn_forward.1} parent=1 // pred_check_branch
      %50 = sbr.rel (0) target = $region25
    $region24: #{rnn_forward.1} parent=1 // pred_region
      _
    $region25: #{rnn_forward.1} parent=1 // pred_fallthru
      _
    // Predicated region
    $region26: #{rnn_forward.1} parent=1 // pred_check
      _
    $region27: #{rnn_forward.1} parent=1 // pred_check_branch
      %52 = sbr.rel (0) target = $region29
    $region28: #{rnn_forward.1} parent=1 // pred_region
      _
    $region29: #{rnn_forward.1} parent=1 // pred_fallthru
      _
    // Predicated region
    $region30: #{rnn_forward.1} parent=1 // pred_check
      _
    $region31: #{rnn_forward.1} parent=1 // pred_check_branch
      %54 = sbr.rel (0) target = $region33
    $region32: #{rnn_forward.1} parent=1 // pred_region
      _
    $region33: #{rnn_forward.1} parent=1 // pred_fallthru
      _
    // Predicated region
    $region34: #{rnn_forward.1} parent=1 // pred_check
      _
    $region35: #{rnn_forward.1} parent=1 // pred_check_branch
      %56 = sbr.rel (0) target = $region37
    $region36: #{rnn_forward.1} parent=1 // pred_region
      %s58 = ssub.s32 16, 16
      %59 = vsyncadd [#allocation8], %s58
      %s61 = sshll.u32 [#allocation9], 4
      %s62 = int_to_ptr.vmem [resolvable:$true] %s61
      %64 = dma.hbm_to_vmem [thread:$0]  %s8, 16, %s62, [#allocation8]
    $region37: #{rnn_forward.1} parent=1 // pred_fallthru
      _
    // Predicated region
    $region38: #{rnn_forward.1} parent=1 // pred_check
      _
    $region39: #{rnn_forward.1} parent=1 // pred_check_branch
      %66 = sbr.rel (0) target = $region41
    $region40: #{rnn_forward.1} parent=1 // pred_region
      %s68 = ssub.s32 16, 16
      %69 = vsyncadd [#allocation11], %s68
      %s71 = sshll.u32 [#allocation10], 4
      %s72 = int_to_ptr.vmem [resolvable:$true] %s71
      %74 = dma.hbm_to_vmem [thread:$0]  %s9, 16, %s72, [#allocation11]
    $region41: #{rnn_forward.1} parent=1 // pred_fallthru
      _
    // Predicated region
    $region42: #{rnn_forward.1} parent=1 // pred_check
      _
    $region43: #{rnn_forward.1} parent=1 // pred_check_branch
      %76 = sbr.rel (0) target = $region45
    $region44: #{rnn_forward.1} parent=1 // pred_region
      %77 = dma.done [#allocation5], 64
    $region45: #{rnn_forward.1} parent=1 // pred_fallthru
      _
    // Predicated region
    $region46: #{rnn_forward.1} parent=1 // pred_check
      _
    $region47: #{rnn_forward.1} parent=1 // pred_check_branch
      %79 = sbr.rel (0) target = $region49
    $region48: #{rnn_forward.1} parent=1 // pred_region
      %80 = dma.done [#allocation8], 512
    $region49: #{rnn_forward.1} parent=1 // pred_fallthru
      _
    // Predicated region
    $region50: #{rnn_forward.1} parent=1 // pred_check
      _
    $region51: #{rnn_forward.1} parent=1 // pred_check_branch
      %82 = sbr.rel (0) target = $region53
    $region52: #{rnn_forward.1} parent=1 // pred_region
      %83 = dma.done [#allocation8], 16
    $region53: #{rnn_forward.1} parent=1 // pred_fallthru
      _
    // Predicated region
    $region54: #{rnn_forward.1} parent=1 // pred_check
      _
    $region55: #{rnn_forward.1} parent=1 // pred_check_branch
      %85 = sbr.rel (0) target = $region57
    $region56: #{rnn_forward.1} parent=1 // pred_region
      %86 = dma.done [#allocation11], 16
    $region57: #{rnn_forward.1} parent=1 // pred_fallthru
      _
    %v87 = vld [vmem:[%s0] sm:$0xff]
    %v88 = vld [vmem:[#allocation4] sm:$0xf]
    %v89 = vld [vmem:[%s5] sm:$0x1]
    %v91 = vlaneseq
    %v92 = vshrl.u32 %v91, 7
    %v93 = vsub.s32 0, %v92
    %v94 = vrot.slane %v89, %v93
    %vm96 = vcmask 31744
    %v98 = vsel %vm96, %v87, 0
    %vm100 = vcmask 1043456
    %v102 = vsel %vm100, %v88, 0
    %104 = vmatprep.subr.mxu0 0.0
    %105 = vmatpush1.msra.mxu0 %v102
    %106 = vmatprep.subr.mxu0 0.0
    %107 = vmatpush1.msra.mxu0 0.0
    %108 = vmatprep.subr.mxu0 0.0
    %109 = vmatpush1.msra.mxu0 0.0
    %110 = vmatprep.subr.mxu0 0.0
    %111 = vmatpush1.msra.mxu0 0.0
    %112 = vmatprep.subr.mxu0 0.0
    %113 = vmatpush1.msra.mxu0 0.0
    %114 = vmatprep.subr.mxu0 0.0
    %115 = vmatpush1.msra.mxu0 0.0
    %116 = vmatprep.subr.mxu0 0.0
    %117 = vmatpush1.msra.mxu0 0.0
    %118 = vmatprep.subr.mxu0 0.0
    %119 = vmatpush1.msra.mxu0 0.0
    %120 = vmatprep.subr.mxu0 0.0
    %121 = vmatpush1.msra.mxu0 0.0
    %122 = vmatprep.subr.mxu0 0.0
    %123 = vmatpush1.msra.mxu0 0.0
    %124 = vmatprep.subr.mxu0 0.0
    %125 = vmatpush1.msra.mxu0 0.0
    %126 = vmatprep.subr.mxu0 0.0
    %127 = vmatpush1.msra.mxu0 0.0
    %128 = vmatprep.subr.mxu0 0.0
    %129 = vmatpush1.msra.mxu0 0.0
    %130 = vmatprep.subr.mxu0 0.0
    %131 = vmatpush1.msra.mxu0 0.0
    %132 = vmatprep.subr.mxu0 0.0
    %133 = vmatpush1.msra.mxu0 0.0
    %134 = vmatprep.subr.mxu0 0.0
    %135 = vmatpush1.msra.mxu0 0.0
    %136 = vmatprep.subr.mxu0 0.0
    %137 = vmatpush1.msra.mxu0 0.0
    %138 = vmatprep.subr.mxu0 0.0
    %139 = vmatpush1.msra.mxu0 0.0
    %140 = vmatprep.subr.mxu0 0.0
    %141 = vmatpush1.msra.mxu0 0.0
    %142 = vmatprep.subr.mxu0 0.0
    %143 = vmatpush1.msra.mxu0 0.0
    %144 = vmatprep.subr.mxu0 0.0
    %145 = vmatpush1.msra.mxu0 0.0
    %146 = vmatprep.subr.mxu0 0.0
    %147 = vmatpush1.msra.mxu0 0.0
    %148 = vmatprep.subr.mxu0 0.0
    %149 = vmatpush1.msra.mxu0 0.0
    %150 = vmatprep.subr.mxu0 0.0
    %151 = vmatpush1.msra.mxu0 0.0
    %152 = vmatprep.subr.mxu0 0.0
    %153 = vmatpush1.msra.mxu0 0.0
    %154 = vmatprep.subr.mxu0 0.0
    %155 = vmatpush1.msra.mxu0 0.0
    %156 = vmatprep.subr.mxu0 0.0
    %157 = vmatpush1.msra.mxu0 0.0
    %158 = vmatprep.subr.mxu0 0.0
    %159 = vmatpush1.msra.mxu0 0.0
    %160 = vmatprep.subr.mxu0 0.0
    %161 = vmatpush1.msra.mxu0 0.0
    %162 = vmatprep.subr.mxu0 0.0
    %163 = vmatpush1.msra.mxu0 0.0
    %164 = vmatprep.subr.mxu0 0.0
    %165 = vmatpush1.msra.mxu0 0.0
    %166 = vmatprep.subr.mxu0 0.0
    %167 = vmatpush1.msra.mxu0 0.0
    %168 = vmatprep.mubr.f32.mxu0 0.0
    %169 = vmatmul.mubr.f32.gmra.mrb[0].mxu0 %v98
    %v170 = vpop.f32.mrb[0].mxu0
    %v171 = vadd.f32 %v94, %v170
    %v172 = vpop.f32.mrb[0].mxu0
    %173 = vdwg.mxu0
    %174 = vst [vmem:[#allocation3] sm:$0xff] %v171
    %v175 = vld [vmem:[%s3] sm:$0xff]
    %v176 = vld [vmem:[%s3 + $0x8] sm:$0xff]
    %v177 = vld [vmem:[%s3 + $0x10] sm:$0xff]
    %v178 = vld [vmem:[%s3 + $0x18] sm:$0xff]
    %v179 = vld [vmem:[#allocation3] sm:$0x1]
    %vm180 = vcmask 261120
    %v182 = vsel %vm180, 0.0, 0
    %184 = vmatprep.subr.mxu0 0.0
    %185 = vmatpush1.msra.mxu0 %v175
    %186 = vmatprep.subr.mxu0 0.0
    %187 = vmatpush1.msra.mxu0 %v176
    %188 = vmatprep.subr.mxu0 0.0
    %189 = vmatpush1.msra.mxu0 %v177
    %190 = vmatprep.subr.mxu0 0.0
    %191 = vmatpush1.msra.mxu0 %v178
    %192 = vmatprep.subr.mxu0 0.0
    %193 = vmatpush1.msra.mxu0 0.0
    %194 = vmatprep.subr.mxu0 0.0
    %195 = vmatpush1.msra.mxu0 0.0
    %196 = vmatprep.subr.mxu0 0.0
    %197 = vmatpush1.msra.mxu0 0.0
    %198 = vmatprep.subr.mxu0 0.0
    %199 = vmatpush1.msra.mxu0 0.0
    %200 = vmatprep.subr.mxu0 0.0
    %201 = vmatpush1.msra.mxu0 0.0
    %202 = vmatprep.subr.mxu0 0.0
    %203 = vmatpush1.msra.mxu0 0.0
    %204 = vmatprep.subr.mxu0 0.0
    %205 = vmatpush1.msra.mxu0 0.0
    %206 = vmatprep.subr.mxu0 0.0
    %207 = vmatpush1.msra.mxu0 0.0
    %208 = vmatprep.subr.mxu0 0.0
    %209 = vmatpush1.msra.mxu0 0.0
    %210 = vmatprep.subr.mxu0 0.0
    %211 = vmatpush1.msra.mxu0 0.0
    %212 = vmatprep.subr.mxu0 0.0
    %213 = vmatpush1.msra.mxu0 0.0
    %214 = vmatprep.subr.mxu0 0.0
    %215 = vmatpush1.msra.mxu0 0.0
    %216 = vmatprep.subr.mxu0 0.0
    %217 = vmatpush1.msra.mxu0 0.0
    %218 = vmatprep.subr.mxu0 0.0
    %219 = vmatpush1.msra.mxu0 0.0
    %220 = vmatprep.subr.mxu0 0.0
    %221 = vmatpush1.msra.mxu0 0.0
    %222 = vmatprep.subr.mxu0 0.0
    %223 = vmatpush1.msra.mxu0 0.0
    %224 = vmatprep.subr.mxu0 0.0
    %225 = vmatpush1.msra.mxu0 0.0
    %226 = vmatprep.subr.mxu0 0.0
    %227 = vmatpush1.msra.mxu0 0.0
    %228 = vmatprep.subr.mxu0 0.0
    %229 = vmatpush1.msra.mxu0 0.0
    %230 = vmatprep.subr.mxu0 0.0
    %231 = vmatpush1.msra.mxu0 0.0
    %232 = vmatprep.subr.mxu0 0.0
    %233 = vmatpush1.msra.mxu0 0.0
    %234 = vmatprep.subr.mxu0 0.0
    %235 = vmatpush1.msra.mxu0 0.0
    %236 = vmatprep.subr.mxu0 0.0
    %237 = vmatpush1.msra.mxu0 0.0
    %238 = vmatprep.subr.mxu0 0.0
    %239 = vmatpush1.msra.mxu0 0.0
    %240 = vmatprep.subr.mxu0 0.0
    %241 = vmatpush1.msra.mxu0 0.0
    %242 = vmatprep.subr.mxu0 0.0
    %243 = vmatpush1.msra.mxu0 0.0
    %244 = vmatprep.subr.mxu0 0.0
    %245 = vmatpush1.msra.mxu0 0.0
    %246 = vmatprep.subr.mxu0 0.0
    %247 = vmatpush1.msra.mxu0 0.0
    %248 = vmatprep.mubr.f32.mxu0 0.0
    %249 = vmatmul.mubr.f32.gmra.mrb[0].mxu0 %v182
    %v250 = vpop.f32.mrb[0].mxu0
    %v251 = vadd.f32 %v179, %v250
    %v252 = vpop.f32.mrb[0].mxu0
    %253 = vdwg.mxu0
    %v254 = vxor.u32 %v251, 2147483648
    %v255 = vmul.f32 %v254, 1.442695
    %v256 = vpow.pop %v255
    %v257 = vadd.f32 %v256, 1.0
    %v258 = vrcp.pop %v257
    %v259 = vmul.f32 1.0, %v258
    %v260 = vtanh.pop %v251
    %v261 = vmul.f32 %v259, 0.0
    %263 = vrot.lane.b32.xlu0 %v260, 64
    %v264 = vpop.permute.xlu0 %263
    %v266 = vmul.f32 %v259, %v264
    %268 = vrot.lane.b32.xlu0 %v266, 32
    %v269 = vpop.permute.xlu0 %268
    %v271 = vadd.f32 %v261, %v269
    %v272 = vtanh.pop %v271
    %274 = vrot.lane.b32.xlu0 %v272, 64
    %v275 = vpop.permute.xlu0 %274
    %v277 = vmul.f32 %v259, %v275
    %279 = vrot.lane.b32.xlu0 %v277, 32
    %v280 = vpop.permute.xlu0 %279
    %vm282 = vcmask 253952
    %283 = vst.msk [vmem:[#allocation2] sm:$0x1] %vm282, %v280
    %v284 = vld [vmem:[#allocation3 + $0x1] sm:$0x1]
    %v285 = vsel %vm180, %v280, 0
    %287 = vmatprep.subr.mxu0 0.0
    %288 = vmatpush1.msra.mxu0 %v175
    %289 = vmatprep.subr.mxu0 0.0
    %290 = vmatpush1.msra.mxu0 %v176
    %291 = vmatprep.subr.mxu0 0.0
    %292 = vmatpush1.msra.mxu0 %v177
    %293 = vmatprep.subr.mxu0 0.0
    %294 = vmatpush1.msra.mxu0 %v178
    %295 = vmatprep.subr.mxu0 0.0
    %296 = vmatpush1.msra.mxu0 0.0
    %297 = vmatprep.subr.mxu0 0.0
    %298 = vmatpush1.msra.mxu0 0.0
    %299 = vmatprep.subr.mxu0 0.0
    %300 = vmatpush1.msra.mxu0 0.0
    %301 = vmatprep.subr.mxu0 0.0
    %302 = vmatpush1.msra.mxu0 0.0
    %303 = vmatprep.subr.mxu0 0.0
    %304 = vmatpush1.msra.mxu0 0.0
    %305 = vmatprep.subr.mxu0 0.0
    %306 = vmatpush1.msra.mxu0 0.0
    %307 = vmatprep.subr.mxu0 0.0
    %308 = vmatpush1.msra.mxu0 0.0
    %309 = vmatprep.subr.mxu0 0.0
    %310 = vmatpush1.msra.mxu0 0.0
    %311 = vmatprep.subr.mxu0 0.0
    %312 = vmatpush1.msra.mxu0 0.0
    %313 = vmatprep.subr.mxu0 0.0
    %314 = vmatpush1.msra.mxu0 0.0
    %315 = vmatprep.subr.mxu0 0.0
    %316 = vmatpush1.msra.mxu0 0.0
    %317 = vmatprep.subr.mxu0 0.0
    %318 = vmatpush1.msra.mxu0 0.0
    %319 = vmatprep.subr.mxu0 0.0
    %320 = vmatpush1.msra.mxu0 0.0
    %321 = vmatprep.subr.mxu0 0.0
    %322 = vmatpush1.msra.mxu0 0.0
    %323 = vmatprep.subr.mxu0 0.0
    %324 = vmatpush1.msra.mxu0 0.0
    %325 = vmatprep.subr.mxu0 0.0
    %326 = vmatpush1.msra.mxu0 0.0
    %327 = vmatprep.subr.mxu0 0.0
    %328 = vmatpush1.msra.mxu0 0.0
    %329 = vmatprep.subr.mxu0 0.0
    %330 = vmatpush1.msra.mxu0 0.0
    %331 = vmatprep.subr.mxu0 0.0
    %332 = vmatpush1.msra.mxu0 0.0
    %333 = vmatprep.subr.mxu0 0.0
    %334 = vmatpush1.msra.mxu0 0.0
    %335 = vmatprep.subr.mxu0 0.0
    %336 = vmatpush1.msra.mxu0 0.0
    %337 = vmatprep.subr.mxu0 0.0
    %338 = vmatpush1.msra.mxu0 0.0
    %339 = vmatprep.subr.mxu0 0.0
    %340 = vmatpush1.msra.mxu0 0.0
    %341 = vmatprep.subr.mxu0 0.0
    %342 = vmatpush1.msra.mxu0 0.0
    %343 = vmatprep.subr.mxu0 0.0
    %344 = vmatpush1.msra.mxu0 0.0
    %345 = vmatprep.subr.mxu0 0.0
    %346 = vmatpush1.msra.mxu0 0.0
    %347 = vmatprep.subr.mxu0 0.0
    %348 = vmatpush1.msra.mxu0 0.0
    %349 = vmatprep.subr.mxu0 0.0
    %350 = vmatpush1.msra.mxu0 0.0
    %351 = vmatprep.mubr.f32.mxu0 0.0
    %352 = vmatmul.mubr.f32.gmra.mrb[0].mxu0 %v285
    %v353 = vpop.f32.mrb[0].mxu0
    %v354 = vadd.f32 %v284, %v353
    %v355 = vpop.f32.mrb[0].mxu0
    %356 = vdwg.mxu0
    %v357 = vxor.u32 %v354, 2147483648
    %v358 = vmul.f32 %v357, 1.442695
    %v359 = vpow.pop %v358
    %v360 = vadd.f32 %v359, 1.0
    %v361 = vrcp.pop %v360
    %v362 = vmul.f32 1.0, %v361
    %v363 = vtanh.pop %v354
    %v364 = vmul.f32 %v362, %v271
    %366 = vrot.lane.b32.xlu0 %v363, 64
    %v367 = vpop.permute.xlu0 %366
    %v369 = vmul.f32 %v362, %v367
    %371 = vrot.lane.b32.xlu0 %v369, 32
    %v372 = vpop.permute.xlu0 %371
    %v374 = vadd.f32 %v364, %v372
    %v375 = vtanh.pop %v374
    %377 = vrot.lane.b32.xlu0 %v375, 64
    %v378 = vpop.permute.xlu0 %377
    %v380 = vmul.f32 %v362, %v378
    %382 = vrot.lane.b32.xlu0 %v380, 32
    %v383 = vpop.permute.xlu0 %382
    %385 = vst.msk [vmem:[#allocation2 + $0x1] sm:$0x1] %vm282, %v383
    %v386 = vld [vmem:[#allocation3 + $0x2] sm:$0x1]
    %v387 = vsel %vm180, %v383, 0
    %389 = vmatprep.subr.mxu0 0.0
    %390 = vmatpush1.msra.mxu0 %v175
    %391 = vmatprep.subr.mxu0 0.0
    %392 = vmatpush1.msra.mxu0 %v176
    %393 = vmatprep.subr.mxu0 0.0
    %394 = vmatpush1.msra.mxu0 %v177
    %395 = vmatprep.subr.mxu0 0.0
    %396 = vmatpush1.msra.mxu0 %v178
    %397 = vmatprep.subr.mxu0 0.0
    %398 = vmatpush1.msra.mxu0 0.0
    %399 = vmatprep.subr.mxu0 0.0
    %400 = vmatpush1.msra.mxu0 0.0
    %401 = vmatprep.subr.mxu0 0.0
    %402 = vmatpush1.msra.mxu0 0.0
    %403 = vmatprep.subr.mxu0 0.0
    %404 = vmatpush1.msra.mxu0 0.0
    %405 = vmatprep.subr.mxu0 0.0
    %406 = vmatpush1.msra.mxu0 0.0
    %407 = vmatprep.subr.mxu0 0.0
    %408 = vmatpush1.msra.mxu0 0.0
    %409 = vmatprep.subr.mxu0 0.0
    %410 = vmatpush1.msra.mxu0 0.0
    %411 = vmatprep.subr.mxu0 0.0
    %412 = vmatpush1.msra.mxu0 0.0
    %413 = vmatprep.subr.mxu0 0.0
    %414 = vmatpush1.msra.mxu0 0.0
    %415 = vmatprep.subr.mxu0 0.0
    %416 = vmatpush1.msra.mxu0 0.0
    %417 = vmatprep.subr.mxu0 0.0
    %418 = vmatpush1.msra.mxu0 0.0
    %419 = vmatprep.subr.mxu0 0.0
    %420 = vmatpush1.msra.mxu0 0.0
    %421 = vmatprep.subr.mxu0 0.0
    %422 = vmatpush1.msra.mxu0 0.0
    %423 = vmatprep.subr.mxu0 0.0
    %424 = vmatpush1.msra.mxu0 0.0
    %425 = vmatprep.subr.mxu0 0.0
    %426 = vmatpush1.msra.mxu0 0.0
    %427 = vmatprep.subr.mxu0 0.0
    %428 = vmatpush1.msra.mxu0 0.0
    %429 = vmatprep.subr.mxu0 0.0
    %430 = vmatpush1.msra.mxu0 0.0
    %431 = vmatprep.subr.mxu0 0.0
    %432 = vmatpush1.msra.mxu0 0.0
    %433 = vmatprep.subr.mxu0 0.0
    %434 = vmatpush1.msra.mxu0 0.0
    %435 = vmatprep.subr.mxu0 0.0
    %436 = vmatpush1.msra.mxu0 0.0
    %437 = vmatprep.subr.mxu0 0.0
    %438 = vmatpush1.msra.mxu0 0.0
    %439 = vmatprep.subr.mxu0 0.0
    %440 = vmatpush1.msra.mxu0 0.0
    %441 = vmatprep.subr.mxu0 0.0
    %442 = vmatpush1.msra.mxu0 0.0
    %443 = vmatprep.subr.mxu0 0.0
    %444 = vmatpush1.msra.mxu0 0.0
    %445 = vmatprep.subr.mxu0 0.0
    %446 = vmatpush1.msra.mxu0 0.0
    %447 = vmatprep.subr.mxu0 0.0
    %448 = vmatpush1.msra.mxu0 0.0
    %449 = vmatprep.subr.mxu0 0.0
    %450 = vmatpush1.msra.mxu0 0.0
    %451 = vmatprep.subr.mxu0 0.0
    %452 = vmatpush1.msra.mxu0 0.0
    %453 = vmatprep.mubr.f32.mxu0 0.0
    %454 = vmatmul.mubr.f32.gmra.mrb[0].mxu0 %v387
    %v455 = vpop.f32.mrb[0].mxu0
    %v456 = vadd.f32 %v386, %v455
    %v457 = vpop.f32.mrb[0].mxu0
    %458 = vdwg.mxu0
    %v459 = vxor.u32 %v456, 2147483648
    %v460 = vmul.f32 %v459, 1.442695
    %v461 = vpow.pop %v460
    %v462 = vadd.f32 %v461, 1.0
    %v463 = vrcp.pop %v462
    %v464 = vmul.f32 1.0, %v463
    %v465 = vtanh.pop %v456
    %v466 = vmul.f32 %v464, %v374
    %468 = vrot.lane.b32.xlu0 %v465, 64
    %v469 = vpop.permute.xlu0 %468
    %v471 = vmul.f32 %v464, %v469
    %473 = vrot.lane.b32.xlu0 %v471, 32
    %v474 = vpop.permute.xlu0 %473
    %v476 = vadd.f32 %v466, %v474
    %v477 = vtanh.pop %v476
    %479 = vrot.lane.b32.xlu0 %v477, 64
    %v480 = vpop.permute.xlu0 %479
    %v482 = vmul.f32 %v464, %v480
    %484 = vrot.lane.b32.xlu0 %v482, 32
    %v485 = vpop.permute.xlu0 %484
    %487 = vst.msk [vmem:[#allocation2 + $0x2] sm:$0x1] %vm282, %v485
    %v488 = vld [vmem:[#allocation3 + $0x3] sm:$0x1]
    %v489 = vsel %vm180, %v485, 0
    %491 = vmatprep.subr.mxu0 0.0
    %492 = vmatpush1.msra.mxu0 %v175
    %493 = vmatprep.subr.mxu0 0.0
    %494 = vmatpush1.msra.mxu0 %v176
    %495 = vmatprep.subr.mxu0 0.0
    %496 = vmatpush1.msra.mxu0 %v177
    %497 = vmatprep.subr.mxu0 0.0
    %498 = vmatpush1.msra.mxu0 %v178
    %499 = vmatprep.subr.mxu0 0.0
    %500 = vmatpush1.msra.mxu0 0.0
    %501 = vmatprep.subr.mxu0 0.0
    %502 = vmatpush1.msra.mxu0 0.0
    %503 = vmatprep.subr.mxu0 0.0
    %504 = vmatpush1.msra.mxu0 0.0
    %505 = vmatprep.subr.mxu0 0.0
    %506 = vmatpush1.msra.mxu0 0.0
    %507 = vmatprep.subr.mxu0 0.0
    %508 = vmatpush1.msra.mxu0 0.0
    %509 = vmatprep.subr.mxu0 0.0
    %510 = vmatpush1.msra.mxu0 0.0
    %511 = vmatprep.subr.mxu0 0.0
    %512 = vmatpush1.msra.mxu0 0.0
    %513 = vmatprep.subr.mxu0 0.0
    %514 = vmatpush1.msra.mxu0 0.0
    %515 = vmatprep.subr.mxu0 0.0
    %516 = vmatpush1.msra.mxu0 0.0
    %517 = vmatprep.subr.mxu0 0.0
    %518 = vmatpush1.msra.mxu0 0.0
    %519 = vmatprep.subr.mxu0 0.0
    %520 = vmatpush1.msra.mxu0 0.0
    %521 = vmatprep.subr.mxu0 0.0
    %522 = vmatpush1.msra.mxu0 0.0
    %523 = vmatprep.subr.mxu0 0.0
    %524 = vmatpush1.msra.mxu0 0.0
    %525 = vmatprep.subr.mxu0 0.0
    %526 = vmatpush1.msra.mxu0 0.0
    %527 = vmatprep.subr.mxu0 0.0
    %528 = vmatpush1.msra.mxu0 0.0
    %529 = vmatprep.subr.mxu0 0.0
    %530 = vmatpush1.msra.mxu0 0.0
    %531 = vmatprep.subr.mxu0 0.0
    %532 = vmatpush1.msra.mxu0 0.0
    %533 = vmatprep.subr.mxu0 0.0
    %534 = vmatpush1.msra.mxu0 0.0
    %535 = vmatprep.subr.mxu0 0.0
    %536 = vmatpush1.msra.mxu0 0.0
    %537 = vmatprep.subr.mxu0 0.0
    %538 = vmatpush1.msra.mxu0 0.0
    %539 = vmatprep.subr.mxu0 0.0
    %540 = vmatpush1.msra.mxu0 0.0
    %541 = vmatprep.subr.mxu0 0.0
    %542 = vmatpush1.msra.mxu0 0.0
    %543 = vmatprep.subr.mxu0 0.0
    %544 = vmatpush1.msra.mxu0 0.0
    %545 = vmatprep.subr.mxu0 0.0
    %546 = vmatpush1.msra.mxu0 0.0
    %547 = vmatprep.subr.mxu0 0.0
    %548 = vmatpush1.msra.mxu0 0.0
    %549 = vmatprep.subr.mxu0 0.0
    %550 = vmatpush1.msra.mxu0 0.0
    %551 = vmatprep.subr.mxu0 0.0
    %552 = vmatpush1.msra.mxu0 0.0
    %553 = vmatprep.subr.mxu0 0.0
    %554 = vmatpush1.msra.mxu0 0.0
    %555 = vmatprep.mubr.f32.mxu0 0.0
    %556 = vmatmul.mubr.f32.gmra.mrb[0].mxu0 %v489
    %v557 = vpop.f32.mrb[0].mxu0
    %v558 = vadd.f32 %v488, %v557
    %v559 = vpop.f32.mrb[0].mxu0
    %560 = vdwg.mxu0
    %v561 = vxor.u32 %v558, 2147483648
    %v562 = vmul.f32 %v561, 1.442695
    %v563 = vpow.pop %v562
    %v564 = vadd.f32 %v563, 1.0
    %v565 = vrcp.pop %v564
    %v566 = vmul.f32 1.0, %v565
    %v567 = vtanh.pop %v558
    %v568 = vmul.f32 %v566, %v476
    %570 = vrot.lane.b32.xlu0 %v567, 64
    %v571 = vpop.permute.xlu0 %570
    %v573 = vmul.f32 %v566, %v571
    %575 = vrot.lane.b32.xlu0 %v573, 32
    %v576 = vpop.permute.xlu0 %575
    %v578 = vadd.f32 %v568, %v576
    %v579 = vtanh.pop %v578
    %581 = vrot.lane.b32.xlu0 %v579, 64
    %v582 = vpop.permute.xlu0 %581
    %v584 = vmul.f32 %v566, %v582
    %586 = vrot.lane.b32.xlu0 %v584, 32
    %v587 = vpop.permute.xlu0 %586
    %589 = vst.msk [vmem:[#allocation2 + $0x3] sm:$0x1] %vm282, %v587
    %v590 = vld [vmem:[#allocation3 + $0x4] sm:$0x1]
    %v591 = vsel %vm180, %v587, 0
    %593 = vmatprep.subr.mxu0 0.0
    %594 = vmatpush1.msra.mxu0 %v175
    %595 = vmatprep.subr.mxu0 0.0
    %596 = vmatpush1.msra.mxu0 %v176
    %597 = vmatprep.subr.mxu0 0.0
    %598 = vmatpush1.msra.mxu0 %v177
    %599 = vmatprep.subr.mxu0 0.0
    %600 = vmatpush1.msra.mxu0 %v178
    %601 = vmatprep.subr.mxu0 0.0
    %602 = vmatpush1.msra.mxu0 0.0
    %603 = vmatprep.subr.mxu0 0.0
    %604 = vmatpush1.msra.mxu0 0.0
    %605 = vmatprep.subr.mxu0 0.0
    %606 = vmatpush1.msra.mxu0 0.0
    %607 = vmatprep.subr.mxu0 0.0
    %608 = vmatpush1.msra.mxu0 0.0
    %609 = vmatprep.subr.mxu0 0.0
    %610 = vmatpush1.msra.mxu0 0.0
    %611 = vmatprep.subr.mxu0 0.0
    %612 = vmatpush1.msra.mxu0 0.0
    %613 = vmatprep.subr.mxu0 0.0
    %614 = vmatpush1.msra.mxu0 0.0
    %615 = vmatprep.subr.mxu0 0.0
    %616 = vmatpush1.msra.mxu0 0.0
    %617 = vmatprep.subr.mxu0 0.0
    %618 = vmatpush1.msra.mxu0 0.0
    %619 = vmatprep.subr.mxu0 0.0
    %620 = vmatpush1.msra.mxu0 0.0
    %621 = vmatprep.subr.mxu0 0.0
    %622 = vmatpush1.msra.mxu0 0.0
    %623 = vmatprep.subr.mxu0 0.0
    %624 = vmatpush1.msra.mxu0 0.0
    %625 = vmatprep.subr.mxu0 0.0
    %626 = vmatpush1.msra.mxu0 0.0
    %627 = vmatprep.subr.mxu0 0.0
    %628 = vmatpush1.msra.mxu0 0.0
    %629 = vmatprep.subr.mxu0 0.0
    %630 = vmatpush1.msra.mxu0 0.0
    %631 = vmatprep.subr.mxu0 0.0
    %632 = vmatpush1.msra.mxu0 0.0
    %633 = vmatprep.subr.mxu0 0.0
    %634 = vmatpush1.msra.mxu0 0.0
    %635 = vmatprep.subr.mxu0 0.0
    %636 = vmatpush1.msra.mxu0 0.0
    %637 = vmatprep.subr.mxu0 0.0
    %638 = vmatpush1.msra.mxu0 0.0
    %639 = vmatprep.subr.mxu0 0.0
    %640 = vmatpush1.msra.mxu0 0.0
    %641 = vmatprep.subr.mxu0 0.0
    %642 = vmatpush1.msra.mxu0 0.0
    %643 = vmatprep.subr.mxu0 0.0
    %644 = vmatpush1.msra.mxu0 0.0
    %645 = vmatprep.subr.mxu0 0.0
    %646 = vmatpush1.msra.mxu0 0.0
    %647 = vmatprep.subr.mxu0 0.0
    %648 = vmatpush1.msra.mxu0 0.0
    %649 = vmatprep.subr.mxu0 0.0
    %650 = vmatpush1.msra.mxu0 0.0
    %651 = vmatprep.subr.mxu0 0.0
    %652 = vmatpush1.msra.mxu0 0.0
    %653 = vmatprep.subr.mxu0 0.0
    %654 = vmatpush1.msra.mxu0 0.0
    %655 = vmatprep.subr.mxu0 0.0
    %656 = vmatpush1.msra.mxu0 0.0
    %657 = vmatprep.mubr.f32.mxu0 0.0
    %658 = vmatmul.mubr.f32.gmra.mrb[0].mxu0 %v591
    %v659 = vpop.f32.mrb[0].mxu0
    %v660 = vadd.f32 %v590, %v659
    %v661 = vpop.f32.mrb[0].mxu0
    %662 = vdwg.mxu0
    %v663 = vxor.u32 %v660, 2147483648
    %v664 = vmul.f32 %v663, 1.442695
    %v665 = vpow.pop %v664
    %v666 = vadd.f32 %v665, 1.0
    %v667 = vrcp.pop %v666
    %v668 = vmul.f32 1.0, %v667
    %v669 = vtanh.pop %v660
    %v670 = vmul.f32 %v668, %v578
    %672 = vrot.lane.b32.xlu0 %v669, 64
    %v673 = vpop.permute.xlu0 %672
    %v675 = vmul.f32 %v668, %v673
    %677 = vrot.lane.b32.xlu0 %v675, 32
    %v678 = vpop.permute.xlu0 %677
    %v680 = vadd.f32 %v670, %v678
    %v681 = vtanh.pop %v680
    %683 = vrot.lane.b32.xlu0 %v681, 64
    %v684 = vpop.permute.xlu0 %683
    %v686 = vmul.f32 %v668, %v684
    %688 = vrot.lane.b32.xlu0 %v686, 32
    %v689 = vpop.permute.xlu0 %688
    %691 = vst.msk [vmem:[#allocation2 + $0x4] sm:$0x1] %vm282, %v689
    %v692 = vld [vmem:[#allocation3 + $0x5] sm:$0x1]
    %v693 = vsel %vm180, %v689, 0
    %695 = vmatprep.subr.mxu0 0.0
    %696 = vmatpush1.msra.mxu0 %v175
    %697 = vmatprep.subr.mxu0 0.0
    %698 = vmatpush1.msra.mxu0 %v176
    %699 = vmatprep.subr.mxu0 0.0
    %700 = vmatpush1.msra.mxu0 %v177
    %701 = vmatprep.subr.mxu0 0.0
    %702 = vmatpush1.msra.mxu0 %v178
    %703 = vmatprep.subr.mxu0 0.0
    %704 = vmatpush1.msra.mxu0 0.0
    %705 = vmatprep.subr.mxu0 0.0
    %706 = vmatpush1.msra.mxu0 0.0
    %707 = vmatprep.subr.mxu0 0.0
    %708 = vmatpush1.msra.mxu0 0.0
    %709 = vmatprep.subr.mxu0 0.0
    %710 = vmatpush1.msra.mxu0 0.0
    %711 = vmatprep.subr.mxu0 0.0
    %712 = vmatpush1.msra.mxu0 0.0
    %713 = vmatprep.subr.mxu0 0.0
    %714 = vmatpush1.msra.mxu0 0.0
    %715 = vmatprep.subr.mxu0 0.0
    %716 = vmatpush1.msra.mxu0 0.0
    %717 = vmatprep.subr.mxu0 0.0
    %718 = vmatpush1.msra.mxu0 0.0
    %719 = vmatprep.subr.mxu0 0.0
    %720 = vmatpush1.msra.mxu0 0.0
    %721 = vmatprep.subr.mxu0 0.0
    %722 = vmatpush1.msra.mxu0 0.0
    %723 = vmatprep.subr.mxu0 0.0
    %724 = vmatpush1.msra.mxu0 0.0
    %725 = vmatprep.subr.mxu0 0.0
    %726 = vmatpush1.msra.mxu0 0.0
    %727 = vmatprep.subr.mxu0 0.0
    %728 = vmatpush1.msra.mxu0 0.0
    %729 = vmatprep.subr.mxu0 0.0
    %730 = vmatpush1.msra.mxu0 0.0
    %731 = vmatprep.subr.mxu0 0.0
    %732 = vmatpush1.msra.mxu0 0.0
    %733 = vmatprep.subr.mxu0 0.0
    %734 = vmatpush1.msra.mxu0 0.0
    %735 = vmatprep.subr.mxu0 0.0
    %736 = vmatpush1.msra.mxu0 0.0
    %737 = vmatprep.subr.mxu0 0.0
    %738 = vmatpush1.msra.mxu0 0.0
    %739 = vmatprep.subr.mxu0 0.0
    %740 = vmatpush1.msra.mxu0 0.0
    %741 = vmatprep.subr.mxu0 0.0
    %742 = vmatpush1.msra.mxu0 0.0
    %743 = vmatprep.subr.mxu0 0.0
    %744 = vmatpush1.msra.mxu0 0.0
    %745 = vmatprep.subr.mxu0 0.0
    %746 = vmatpush1.msra.mxu0 0.0
    %747 = vmatprep.subr.mxu0 0.0
    %748 = vmatpush1.msra.mxu0 0.0
    %749 = vmatprep.subr.mxu0 0.0
    %750 = vmatpush1.msra.mxu0 0.0
    %751 = vmatprep.subr.mxu0 0.0
    %752 = vmatpush1.msra.mxu0 0.0
    %753 = vmatprep.subr.mxu0 0.0
    %754 = vmatpush1.msra.mxu0 0.0
    %755 = vmatprep.subr.mxu0 0.0
    %756 = vmatpush1.msra.mxu0 0.0
    %757 = vmatprep.subr.mxu0 0.0
    %758 = vmatpush1.msra.mxu0 0.0
    %759 = vmatprep.mubr.f32.mxu0 0.0
    %760 = vmatmul.mubr.f32.gmra.mrb[0].mxu0 %v693
    %v761 = vpop.f32.mrb[0].mxu0
    %v762 = vadd.f32 %v692, %v761
    %v763 = vpop.f32.mrb[0].mxu0
    %764 = vdwg.mxu0
    %v765 = vxor.u32 %v762, 2147483648
    %v766 = vmul.f32 %v765, 1.442695
    %v767 = vpow.pop %v766
    %v768 = vadd.f32 %v767, 1.0
    %v769 = vrcp.pop %v768
    %v770 = vmul.f32 1.0, %v769
    %v771 = vtanh.pop %v762
    %v772 = vmul.f32 %v770, %v680
    %774 = vrot.lane.b32.xlu0 %v771, 64
    %v775 = vpop.permute.xlu0 %774
    %v777 = vmul.f32 %v770, %v775
    %779 = vrot.lane.b32.xlu0 %v777, 32
    %v780 = vpop.permute.xlu0 %779
    %v782 = vadd.f32 %v772, %v780
    %v783 = vtanh.pop %v782
    %785 = vrot.lane.b32.xlu0 %v783, 64
    %v786 = vpop.permute.xlu0 %785
    %v788 = vmul.f32 %v770, %v786
    %790 = vrot.lane.b32.xlu0 %v788, 32
    %v791 = vpop.permute.xlu0 %790
    %793 = vst.msk [vmem:[#allocation2 + $0x5] sm:$0x1] %vm282, %v791
    %v794 = vld [vmem:[#allocation3 + $0x6] sm:$0x1]
    %v795 = vsel %vm180, %v791, 0
    %797 = vmatprep.subr.mxu0 0.0
    %798 = vmatpush1.msra.mxu0 %v175
    %799 = vmatprep.subr.mxu0 0.0
    %800 = vmatpush1.msra.mxu0 %v176
    %801 = vmatprep.subr.mxu0 0.0
    %802 = vmatpush1.msra.mxu0 %v177
    %803 = vmatprep.subr.mxu0 0.0
    %804 = vmatpush1.msra.mxu0 %v178
    %805 = vmatprep.subr.mxu0 0.0
    %806 = vmatpush1.msra.mxu0 0.0
    %807 = vmatprep.subr.mxu0 0.0
    %808 = vmatpush1.msra.mxu0 0.0
    %809 = vmatprep.subr.mxu0 0.0
    %810 = vmatpush1.msra.mxu0 0.0
    %811 = vmatprep.subr.mxu0 0.0
    %812 = vmatpush1.msra.mxu0 0.0
    %813 = vmatprep.subr.mxu0 0.0
    %814 = vmatpush1.msra.mxu0 0.0
    %815 = vmatprep.subr.mxu0 0.0
    %816 = vmatpush1.msra.mxu0 0.0
    %817 = vmatprep.subr.mxu0 0.0
    %818 = vmatpush1.msra.mxu0 0.0
    %819 = vmatprep.subr.mxu0 0.0
    %820 = vmatpush1.msra.mxu0 0.0
    %821 = vmatprep.subr.mxu0 0.0
    %822 = vmatpush1.msra.mxu0 0.0
    %823 = vmatprep.subr.mxu0 0.0
    %824 = vmatpush1.msra.mxu0 0.0
    %825 = vmatprep.subr.mxu0 0.0
    %826 = vmatpush1.msra.mxu0 0.0
    %827 = vmatprep.subr.mxu0 0.0
    %828 = vmatpush1.msra.mxu0 0.0
    %829 = vmatprep.subr.mxu0 0.0
    %830 = vmatpush1.msra.mxu0 0.0
    %831 = vmatprep.subr.mxu0 0.0
    %832 = vmatpush1.msra.mxu0 0.0
    %833 = vmatprep.subr.mxu0 0.0
    %834 = vmatpush1.msra.mxu0 0.0
    %835 = vmatprep.subr.mxu0 0.0
    %836 = vmatpush1.msra.mxu0 0.0
    %837 = vmatprep.subr.mxu0 0.0
    %838 = vmatpush1.msra.mxu0 0.0
    %839 = vmatprep.subr.mxu0 0.0
    %840 = vmatpush1.msra.mxu0 0.0
    %841 = vmatprep.subr.mxu0 0.0
    %842 = vmatpush1.msra.mxu0 0.0
    %843 = vmatprep.subr.mxu0 0.0
    %844 = vmatpush1.msra.mxu0 0.0
    %845 = vmatprep.subr.mxu0 0.0
    %846 = vmatpush1.msra.mxu0 0.0
    %847 = vmatprep.subr.mxu0 0.0
    %848 = vmatpush1.msra.mxu0 0.0
    %849 = vmatprep.subr.mxu0 0.0
    %850 = vmatpush1.msra.mxu0 0.0
    %851 = vmatprep.subr.mxu0 0.0
    %852 = vmatpush1.msra.mxu0 0.0
    %853 = vmatprep.subr.mxu0 0.0
    %854 = vmatpush1.msra.mxu0 0.0
    %855 = vmatprep.subr.mxu0 0.0
    %856 = vmatpush1.msra.mxu0 0.0
    %857 = vmatprep.subr.mxu0 0.0
    %858 = vmatpush1.msra.mxu0 0.0
    %859 = vmatprep.subr.mxu0 0.0
    %860 = vmatpush1.msra.mxu0 0.0
    %861 = vmatprep.mubr.f32.mxu0 0.0
    %862 = vmatmul.mubr.f32.gmra.mrb[0].mxu0 %v795
    %v863 = vpop.f32.mrb[0].mxu0
    %v864 = vadd.f32 %v794, %v863
    %v865 = vpop.f32.mrb[0].mxu0
    %866 = vdwg.mxu0
    %v867 = vxor.u32 %v864, 2147483648
    %v868 = vmul.f32 %v867, 1.442695
    %v869 = vpow.pop %v868
    %v870 = vadd.f32 %v869, 1.0
    %v871 = vrcp.pop %v870
    %v872 = vmul.f32 1.0, %v871
    %v873 = vtanh.pop %v864
    %v874 = vmul.f32 %v872, %v782
    %876 = vrot.lane.b32.xlu0 %v873, 64
    %v877 = vpop.permute.xlu0 %876
    %v879 = vmul.f32 %v872, %v877
    %881 = vrot.lane.b32.xlu0 %v879, 32
    %v882 = vpop.permute.xlu0 %881
    %v884 = vadd.f32 %v874, %v882
    %v885 = vtanh.pop %v884
    %887 = vrot.lane.b32.xlu0 %v885, 64
    %v888 = vpop.permute.xlu0 %887
    %v890 = vmul.f32 %v872, %v888
    %892 = vrot.lane.b32.xlu0 %v890, 32
    %v893 = vpop.permute.xlu0 %892
    %895 = vst.msk [vmem:[#allocation2 + $0x6] sm:$0x1] %vm282, %v893
    %v896 = vld [vmem:[#allocation3 + $0x7] sm:$0x1]
    %v897 = vsel %vm180, %v893, 0
    %899 = vmatprep.subr.mxu0 0.0
    %900 = vmatpush1.msra.mxu0 %v175
    %901 = vmatprep.subr.mxu0 0.0
    %902 = vmatpush1.msra.mxu0 %v176
    %903 = vmatprep.subr.mxu0 0.0
    %904 = vmatpush1.msra.mxu0 %v177
    %905 = vmatprep.subr.mxu0 0.0
    %906 = vmatpush1.msra.mxu0 %v178
    %907 = vmatprep.subr.mxu0 0.0
    %908 = vmatpush1.msra.mxu0 0.0
    %909 = vmatprep.subr.mxu0 0.0
    %910 = vmatpush1.msra.mxu0 0.0
    %911 = vmatprep.subr.mxu0 0.0
    %912 = vmatpush1.msra.mxu0 0.0
    %913 = vmatprep.subr.mxu0 0.0
    %914 = vmatpush1.msra.mxu0 0.0
    %915 = vmatprep.subr.mxu0 0.0
    %916 = vmatpush1.msra.mxu0 0.0
    %917 = vmatprep.subr.mxu0 0.0
    %918 = vmatpush1.msra.mxu0 0.0
    %919 = vmatprep.subr.mxu0 0.0
    %920 = vmatpush1.msra.mxu0 0.0
    %921 = vmatprep.subr.mxu0 0.0
    %922 = vmatpush1.msra.mxu0 0.0
    %923 = vmatprep.subr.mxu0 0.0
    %924 = vmatpush1.msra.mxu0 0.0
    %925 = vmatprep.subr.mxu0 0.0
    %926 = vmatpush1.msra.mxu0 0.0
    %927 = vmatprep.subr.mxu0 0.0
    %928 = vmatpush1.msra.mxu0 0.0
    %929 = vmatprep.subr.mxu0 0.0
    %930 = vmatpush1.msra.mxu0 0.0
    %931 = vmatprep.subr.mxu0 0.0
    %932 = vmatpush1.msra.mxu0 0.0
    %933 = vmatprep.subr.mxu0 0.0
    %934 = vmatpush1.msra.mxu0 0.0
    %935 = vmatprep.subr.mxu0 0.0
    %936 = vmatpush1.msra.mxu0 0.0
    %937 = vmatprep.subr.mxu0 0.0
    %938 = vmatpush1.msra.mxu0 0.0
    %939 = vmatprep.subr.mxu0 0.0
    %940 = vmatpush1.msra.mxu0 0.0
    %941 = vmatprep.subr.mxu0 0.0
    %942 = vmatpush1.msra.mxu0 0.0
    %943 = vmatprep.subr.mxu0 0.0
    %944 = vmatpush1.msra.mxu0 0.0
    %945 = vmatprep.subr.mxu0 0.0
    %946 = vmatpush1.msra.mxu0 0.0
    %947 = vmatprep.subr.mxu0 0.0
    %948 = vmatpush1.msra.mxu0 0.0
    %949 = vmatprep.subr.mxu0 0.0
    %950 = vmatpush1.msra.mxu0 0.0
    %951 = vmatprep.subr.mxu0 0.0
    %952 = vmatpush1.msra.mxu0 0.0
    %953 = vmatprep.subr.mxu0 0.0
    %954 = vmatpush1.msra.mxu0 0.0
    %955 = vmatprep.subr.mxu0 0.0
    %956 = vmatpush1.msra.mxu0 0.0
    %957 = vmatprep.subr.mxu0 0.0
    %958 = vmatpush1.msra.mxu0 0.0
    %959 = vmatprep.subr.mxu0 0.0
    %960 = vmatpush1.msra.mxu0 0.0
    %961 = vmatprep.subr.mxu0 0.0
    %962 = vmatpush1.msra.mxu0 0.0
    %963 = vmatprep.mubr.f32.mxu0 0.0
    %964 = vmatmul.mubr.f32.gmra.mrb[0].mxu0 %v897
    %v965 = vpop.f32.mrb[0].mxu0
    %v966 = vadd.f32 %v896, %v965
    %v967 = vpop.f32.mrb[0].mxu0
    %968 = vdwg.mxu0
    %v969 = vxor.u32 %v966, 2147483648
    %v970 = vmul.f32 %v969, 1.442695
    %v971 = vpow.pop %v970
    %v972 = vadd.f32 %v971, 1.0
    %v973 = vrcp.pop %v972
    %v974 = vmul.f32 1.0, %v973
    %v975 = vtanh.pop %v966
    %v976 = vmul.f32 %v974, %v884
    %978 = vrot.lane.b32.xlu0 %v975, 64
    %v979 = vpop.permute.xlu0 %978
    %v981 = vmul.f32 %v974, %v979
    %983 = vrot.lane.b32.xlu0 %v981, 32
    %v984 = vpop.permute.xlu0 %983
    %v986 = vadd.f32 %v976, %v984
    %v987 = vtanh.pop %v986
    %989 = vrot.lane.b32.xlu0 %v987, 64
    %v990 = vpop.permute.xlu0 %989
    %v992 = vmul.f32 %v974, %v990
    %994 = vrot.lane.b32.xlu0 %v992, 32
    %v995 = vpop.permute.xlu0 %994
    %997 = vst.msk [vmem:[#allocation2 + $0x7] sm:$0x1] %vm282, %v995
    %v998 = vld [vmem:[#allocation2] sm:$0xff]
    %v999 = vld [vmem:[%s2] sm:$0xff]
    %v1000 = vld [vmem:[%s2 + $0x8] sm:$0xff]
    %v1001 = vld [vmem:[%s2 + $0x10] sm:$0xff]
    %v1002 = vld [vmem:[%s2 + $0x18] sm:$0xff]
    %v1003 = vld [vmem:[%s6] sm:$0x1]
    %v1005 = vlaneseq
    %v1006 = vshrl.u32 %v1005, 7
    %v1007 = vsub.s32 0, %v1006
    %v1008 = vrot.slane %v1003, %v1007
    %v1011 = vsel %vm180, %v998, 0
    %1013 = vmatprep.subr.mxu0 0.0
    %1014 = vmatpush1.msra.mxu0 %v999
    %1015 = vmatprep.subr.mxu0 0.0
    %1016 = vmatpush1.msra.mxu0 %v1000
    %1017 = vmatprep.subr.mxu0 0.0
    %1018 = vmatpush1.msra.mxu0 %v1001
    %1019 = vmatprep.subr.mxu0 0.0
    %1020 = vmatpush1.msra.mxu0 %v1002
    %1021 = vmatprep.subr.mxu0 0.0
    %1022 = vmatpush1.msra.mxu0 0.0
    %1023 = vmatprep.subr.mxu0 0.0
    %1024 = vmatpush1.msra.mxu0 0.0
    %1025 = vmatprep.subr.mxu0 0.0
    %1026 = vmatpush1.msra.mxu0 0.0
    %1027 = vmatprep.subr.mxu0 0.0
    %1028 = vmatpush1.msra.mxu0 0.0
    %1029 = vmatprep.subr.mxu0 0.0
    %1030 = vmatpush1.msra.mxu0 0.0
    %1031 = vmatprep.subr.mxu0 0.0
    %1032 = vmatpush1.msra.mxu0 0.0
    %1033 = vmatprep.subr.mxu0 0.0
    %1034 = vmatpush1.msra.mxu0 0.0
    %1035 = vmatprep.subr.mxu0 0.0
    %1036 = vmatpush1.msra.mxu0 0.0
    %1037 = vmatprep.subr.mxu0 0.0
    %1038 = vmatpush1.msra.mxu0 0.0
    %1039 = vmatprep.subr.mxu0 0.0
    %1040 = vmatpush1.msra.mxu0 0.0
    %1041 = vmatprep.subr.mxu0 0.0
    %1042 = vmatpush1.msra.mxu0 0.0
    %1043 = vmatprep.subr.mxu0 0.0
    %1044 = vmatpush1.msra.mxu0 0.0
    %1045 = vmatprep.subr.mxu0 0.0
    %1046 = vmatpush1.msra.mxu0 0.0
    %1047 = vmatprep.subr.mxu0 0.0
    %1048 = vmatpush1.msra.mxu0 0.0
    %1049 = vmatprep.subr.mxu0 0.0
    %1050 = vmatpush1.msra.mxu0 0.0
    %1051 = vmatprep.subr.mxu0 0.0
    %1052 = vmatpush1.msra.mxu0 0.0
    %1053 = vmatprep.subr.mxu0 0.0
    %1054 = vmatpush1.msra.mxu0 0.0
    %1055 = vmatprep.subr.mxu0 0.0
    %1056 = vmatpush1.msra.mxu0 0.0
    %1057 = vmatprep.subr.mxu0 0.0
    %1058 = vmatpush1.msra.mxu0 0.0
    %1059 = vmatprep.subr.mxu0 0.0
    %1060 = vmatpush1.msra.mxu0 0.0
    %1061 = vmatprep.subr.mxu0 0.0
    %1062 = vmatpush1.msra.mxu0 0.0
    %1063 = vmatprep.subr.mxu0 0.0
    %1064 = vmatpush1.msra.mxu0 0.0
    %1065 = vmatprep.subr.mxu0 0.0
    %1066 = vmatpush1.msra.mxu0 0.0
    %1067 = vmatprep.subr.mxu0 0.0
    %1068 = vmatpush1.msra.mxu0 0.0
    %1069 = vmatprep.subr.mxu0 0.0
    %1070 = vmatpush1.msra.mxu0 0.0
    %1071 = vmatprep.subr.mxu0 0.0
    %1072 = vmatpush1.msra.mxu0 0.0
    %1073 = vmatprep.subr.mxu0 0.0
    %1074 = vmatpush1.msra.mxu0 0.0
    %1075 = vmatprep.subr.mxu0 0.0
    %1076 = vmatpush1.msra.mxu0 0.0
    %1077 = vmatprep.mubr.f32.mxu0 0.0
    %1078 = vmatmul.mubr.f32.gmra.mrb[0].mxu0 %v1011
    %v1079 = vpop.f32.mrb[0].mxu0
    %v1080 = vadd.f32 %v1008, %v1079
    %v1081 = vpop.f32.mrb[0].mxu0
    %1082 = vdwg.mxu0
    %1083 = vst [vmem:[#allocation3] sm:$0xff] %v1080
    %v1084 = vld [vmem:[#allocation7] sm:$0xff]
    %v1085 = vld [vmem:[#allocation7 + $0x8] sm:$0xff]
    %v1086 = vld [vmem:[#allocation7 + $0x10] sm:$0xff]
    %v1087 = vld [vmem:[#allocation7 + $0x18] sm:$0xff]
    %v1088 = vld [vmem:[#allocation3] sm:$0x1]
    %1089 = vmatprep.subr.mxu0 0.0
    %1090 = vmatpush1.msra.mxu0 %v1084
    %1091 = vmatprep.subr.mxu0 0.0
    %1092 = vmatpush1.msra.mxu0 %v1085
    %1093 = vmatprep.subr.mxu0 0.0
    %1094 = vmatpush1.msra.mxu0 %v1086
    %1095 = vmatprep.subr.mxu0 0.0
    %1096 = vmatpush1.msra.mxu0 %v1087
    %1097 = vmatprep.subr.mxu0 0.0
    %1098 = vmatpush1.msra.mxu0 0.0
    %1099 = vmatprep.subr.mxu0 0.0
    %1100 = vmatpush1.msra.mxu0 0.0
    %1101 = vmatprep.subr.mxu0 0.0
    %1102 = vmatpush1.msra.mxu0 0.0
    %1103 = vmatprep.subr.mxu0 0.0
    %1104 = vmatpush1.msra.mxu0 0.0
    %1105 = vmatprep.subr.mxu0 0.0
    %1106 = vmatpush1.msra.mxu0 0.0
    %1107 = vmatprep.subr.mxu0 0.0
    %1108 = vmatpush1.msra.mxu0 0.0
    %1109 = vmatprep.subr.mxu0 0.0
    %1110 = vmatpush1.msra.mxu0 0.0
    %1111 = vmatprep.subr.mxu0 0.0
    %1112 = vmatpush1.msra.mxu0 0.0
    %1113 = vmatprep.subr.mxu0 0.0
    %1114 = vmatpush1.msra.mxu0 0.0
    %1115 = vmatprep.subr.mxu0 0.0
    %1116 = vmatpush1.msra.mxu0 0.0
    %1117 = vmatprep.subr.mxu0 0.0
    %1118 = vmatpush1.msra.mxu0 0.0
    %1119 = vmatprep.subr.mxu0 0.0
    %1120 = vmatpush1.msra.mxu0 0.0
    %1121 = vmatprep.subr.mxu0 0.0
    %1122 = vmatpush1.msra.mxu0 0.0
    %1123 = vmatprep.subr.mxu0 0.0
    %1124 = vmatpush1.msra.mxu0 0.0
    %1125 = vmatprep.subr.mxu0 0.0
    %1126 = vmatpush1.msra.mxu0 0.0
    %1127 = vmatprep.subr.mxu0 0.0
    %1128 = vmatpush1.msra.mxu0 0.0
    %1129 = vmatprep.subr.mxu0 0.0
    %1130 = vmatpush1.msra.mxu0 0.0
    %1131 = vmatprep.subr.mxu0 0.0
    %1132 = vmatpush1.msra.mxu0 0.0
    %1133 = vmatprep.subr.mxu0 0.0
    %1134 = vmatpush1.msra.mxu0 0.0
    %1135 = vmatprep.subr.mxu0 0.0
    %1136 = vmatpush1.msra.mxu0 0.0
    %1137 = vmatprep.subr.mxu0 0.0
    %1138 = vmatpush1.msra.mxu0 0.0
    %1139 = vmatprep.subr.mxu0 0.0
    %1140 = vmatpush1.msra.mxu0 0.0
    %1141 = vmatprep.subr.mxu0 0.0
    %1142 = vmatpush1.msra.mxu0 0.0
    %1143 = vmatprep.subr.mxu0 0.0
    %1144 = vmatpush1.msra.mxu0 0.0
    %1145 = vmatprep.subr.mxu0 0.0
    %1146 = vmatpush1.msra.mxu0 0.0
    %1147 = vmatprep.subr.mxu0 0.0
    %1148 = vmatpush1.msra.mxu0 0.0
    %1149 = vmatprep.subr.mxu0 0.0
    %1150 = vmatpush1.msra.mxu0 0.0
    %1151 = vmatprep.subr.mxu0 0.0
    %1152 = vmatpush1.msra.mxu0 0.0
    %1153 = vmatprep.mubr.f32.mxu0 0.0
    %1154 = vmatmul.mubr.f32.gmra.mrb[0].mxu0 %v182
    %v1155 = vpop.f32.mrb[0].mxu0
    %v1156 = vadd.f32 %v1088, %v1155
    %v1157 = vpop.f32.mrb[0].mxu0
    %1158 = vdwg.mxu0
    %v1159 = vxor.u32 %v1156, 2147483648
    %v1160 = vmul.f32 %v1159, 1.442695
    %v1161 = vpow.pop %v1160
    %v1162 = vadd.f32 %v1161, 1.0
    %v1163 = vrcp.pop %v1162
    %v1164 = vmul.f32 1.0, %v1163
    %v1165 = vtanh.pop %v1156
    %v1166 = vmul.f32 %v1164, 0.0
    %1168 = vrot.lane.b32.xlu0 %v1165, 64
    %v1169 = vpop.permute.xlu0 %1168
    %v1171 = vmul.f32 %v1164, %v1169
    %1173 = vrot.lane.b32.xlu0 %v1171, 32
    %v1174 = vpop.permute.xlu0 %1173
    %v1176 = vadd.f32 %v1166, %v1174
    %v1177 = vtanh.pop %v1176
    %1179 = vrot.lane.b32.xlu0 %v1177, 64
    %v1180 = vpop.permute.xlu0 %1179
    %v1182 = vmul.f32 %v1164, %v1180
    %v1183 = vld [vmem:[#allocation3 + $0x1] sm:$0x1]
    %1185 = vrot.lane.b32.xlu0 %v1182, 32
    %v1186 = vpop.permute.xlu0 %1185
    %v1187 = vsel %vm180, %v1186, 0
    %1189 = vmatprep.subr.mxu0 0.0
    %1190 = vmatpush1.msra.mxu0 %v1084
    %1191 = vmatprep.subr.mxu0 0.0
    %1192 = vmatpush1.msra.mxu0 %v1085
    %1193 = vmatprep.subr.mxu0 0.0
    %1194 = vmatpush1.msra.mxu0 %v1086
    %1195 = vmatprep.subr.mxu0 0.0
    %1196 = vmatpush1.msra.mxu0 %v1087
    %1197 = vmatprep.subr.mxu0 0.0
    %1198 = vmatpush1.msra.mxu0 0.0
    %1199 = vmatprep.subr.mxu0 0.0
    %1200 = vmatpush1.msra.mxu0 0.0
    %1201 = vmatprep.subr.mxu0 0.0
    %1202 = vmatpush1.msra.mxu0 0.0
    %1203 = vmatprep.subr.mxu0 0.0
    %1204 = vmatpush1.msra.mxu0 0.0
    %1205 = vmatprep.subr.mxu0 0.0
    %1206 = vmatpush1.msra.mxu0 0.0
    %1207 = vmatprep.subr.mxu0 0.0
    %1208 = vmatpush1.msra.mxu0 0.0
    %1209 = vmatprep.subr.mxu0 0.0
    %1210 = vmatpush1.msra.mxu0 0.0
    %1211 = vmatprep.subr.mxu0 0.0
    %1212 = vmatpush1.msra.mxu0 0.0
    %1213 = vmatprep.subr.mxu0 0.0
    %1214 = vmatpush1.msra.mxu0 0.0
    %1215 = vmatprep.subr.mxu0 0.0
    %1216 = vmatpush1.msra.mxu0 0.0
    %1217 = vmatprep.subr.mxu0 0.0
    %1218 = vmatpush1.msra.mxu0 0.0
    %1219 = vmatprep.subr.mxu0 0.0
    %1220 = vmatpush1.msra.mxu0 0.0
    %1221 = vmatprep.subr.mxu0 0.0
    %1222 = vmatpush1.msra.mxu0 0.0
    %1223 = vmatprep.subr.mxu0 0.0
    %1224 = vmatpush1.msra.mxu0 0.0
    %1225 = vmatprep.subr.mxu0 0.0
    %1226 = vmatpush1.msra.mxu0 0.0
    %1227 = vmatprep.subr.mxu0 0.0
    %1228 = vmatpush1.msra.mxu0 0.0
    %1229 = vmatprep.subr.mxu0 0.0
    %1230 = vmatpush1.msra.mxu0 0.0
    %1231 = vmatprep.subr.mxu0 0.0
    %1232 = vmatpush1.msra.mxu0 0.0
    %1233 = vmatprep.subr.mxu0 0.0
    %1234 = vmatpush1.msra.mxu0 0.0
    %1235 = vmatprep.subr.mxu0 0.0
    %1236 = vmatpush1.msra.mxu0 0.0
    %1237 = vmatprep.subr.mxu0 0.0
    %1238 = vmatpush1.msra.mxu0 0.0
    %1239 = vmatprep.subr.mxu0 0.0
    %1240 = vmatpush1.msra.mxu0 0.0
    %1241 = vmatprep.subr.mxu0 0.0
    %1242 = vmatpush1.msra.mxu0 0.0
    %1243 = vmatprep.subr.mxu0 0.0
    %1244 = vmatpush1.msra.mxu0 0.0
    %1245 = vmatprep.subr.mxu0 0.0
    %1246 = vmatpush1.msra.mxu0 0.0
    %1247 = vmatprep.subr.mxu0 0.0
    %1248 = vmatpush1.msra.mxu0 0.0
    %1249 = vmatprep.subr.mxu0 0.0
    %1250 = vmatpush1.msra.mxu0 0.0
    %1251 = vmatprep.subr.mxu0 0.0
    %1252 = vmatpush1.msra.mxu0 0.0
    %1253 = vmatprep.mubr.f32.mxu0 0.0
    %1254 = vmatmul.mubr.f32.gmra.mrb[0].mxu0 %v1187
    %v1255 = vpop.f32.mrb[0].mxu0
    %v1256 = vadd.f32 %v1183, %v1255
    %v1257 = vpop.f32.mrb[0].mxu0
    %1258 = vdwg.mxu0
    %v1259 = vxor.u32 %v1256, 2147483648
    %v1260 = vmul.f32 %v1259, 1.442695
    %v1261 = vpow.pop %v1260
    %v1262 = vadd.f32 %v1261, 1.0
    %v1263 = vrcp.pop %v1262
    %v1264 = vmul.f32 1.0, %v1263
    %v1265 = vtanh.pop %v1256
    %v1266 = vmul.f32 %v1264, %v1176
    %1268 = vrot.lane.b32.xlu0 %v1265, 64
    %v1269 = vpop.permute.xlu0 %1268
    %v1271 = vmul.f32 %v1264, %v1269
    %1273 = vrot.lane.b32.xlu0 %v1271, 32
    %v1274 = vpop.permute.xlu0 %1273
    %v1276 = vadd.f32 %v1266, %v1274
    %v1277 = vtanh.pop %v1276
    %1279 = vrot.lane.b32.xlu0 %v1277, 64
    %v1280 = vpop.permute.xlu0 %1279
    %v1282 = vmul.f32 %v1264, %v1280
    %v1283 = vld [vmem:[#allocation3 + $0x2] sm:$0x1]
    %1285 = vrot.lane.b32.xlu0 %v1282, 32
    %v1286 = vpop.permute.xlu0 %1285
    %v1287 = vsel %vm180, %v1286, 0
    %1289 = vmatprep.subr.mxu0 0.0
    %1290 = vmatpush1.msra.mxu0 %v1084
    %1291 = vmatprep.subr.mxu0 0.0
    %1292 = vmatpush1.msra.mxu0 %v1085
    %1293 = vmatprep.subr.mxu0 0.0
    %1294 = vmatpush1.msra.mxu0 %v1086
    %1295 = vmatprep.subr.mxu0 0.0
    %1296 = vmatpush1.msra.mxu0 %v1087
    %1297 = vmatprep.subr.mxu0 0.0
    %1298 = vmatpush1.msra.mxu0 0.0
    %1299 = vmatprep.subr.mxu0 0.0
    %1300 = vmatpush1.msra.mxu0 0.0
    %1301 = vmatprep.subr.mxu0 0.0
    %1302 = vmatpush1.msra.mxu0 0.0
    %1303 = vmatprep.subr.mxu0 0.0
    %1304 = vmatpush1.msra.mxu0 0.0
    %1305 = vmatprep.subr.mxu0 0.0
    %1306 = vmatpush1.msra.mxu0 0.0
    %1307 = vmatprep.subr.mxu0 0.0
    %1308 = vmatpush1.msra.mxu0 0.0
    %1309 = vmatprep.subr.mxu0 0.0
    %1310 = vmatpush1.msra.mxu0 0.0
    %1311 = vmatprep.subr.mxu0 0.0
    %1312 = vmatpush1.msra.mxu0 0.0
    %1313 = vmatprep.subr.mxu0 0.0
    %1314 = vmatpush1.msra.mxu0 0.0
    %1315 = vmatprep.subr.mxu0 0.0
    %1316 = vmatpush1.msra.mxu0 0.0
    %1317 = vmatprep.subr.mxu0 0.0
    %1318 = vmatpush1.msra.mxu0 0.0
    %1319 = vmatprep.subr.mxu0 0.0
    %1320 = vmatpush1.msra.mxu0 0.0
    %1321 = vmatprep.subr.mxu0 0.0
    %1322 = vmatpush1.msra.mxu0 0.0
    %1323 = vmatprep.subr.mxu0 0.0
    %1324 = vmatpush1.msra.mxu0 0.0
    %1325 = vmatprep.subr.mxu0 0.0
    %1326 = vmatpush1.msra.mxu0 0.0
    %1327 = vmatprep.subr.mxu0 0.0
    %1328 = vmatpush1.msra.mxu0 0.0
    %1329 = vmatprep.subr.mxu0 0.0
    %1330 = vmatpush1.msra.mxu0 0.0
    %1331 = vmatprep.subr.mxu0 0.0
    %1332 = vmatpush1.msra.mxu0 0.0
    %1333 = vmatprep.subr.mxu0 0.0
    %1334 = vmatpush1.msra.mxu0 0.0
    %1335 = vmatprep.subr.mxu0 0.0
    %1336 = vmatpush1.msra.mxu0 0.0
    %1337 = vmatprep.subr.mxu0 0.0
    %1338 = vmatpush1.msra.mxu0 0.0
    %1339 = vmatprep.subr.mxu0 0.0
    %1340 = vmatpush1.msra.mxu0 0.0
    %1341 = vmatprep.subr.mxu0 0.0
    %1342 = vmatpush1.msra.mxu0 0.0
    %1343 = vmatprep.subr.mxu0 0.0
    %1344 = vmatpush1.msra.mxu0 0.0
    %1345 = vmatprep.subr.mxu0 0.0
    %1346 = vmatpush1.msra.mxu0 0.0
    %1347 = vmatprep.subr.mxu0 0.0
    %1348 = vmatpush1.msra.mxu0 0.0
    %1349 = vmatprep.subr.mxu0 0.0
    %1350 = vmatpush1.msra.mxu0 0.0
    %1351 = vmatprep.subr.mxu0 0.0
    %1352 = vmatpush1.msra.mxu0 0.0
    %1353 = vmatprep.mubr.f32.mxu0 0.0
    %1354 = vmatmul.mubr.f32.gmra.mrb[0].mxu0 %v1287
    %v1355 = vpop.f32.mrb[0].mxu0
    %v1356 = vadd.f32 %v1283, %v1355
    %v1357 = vpop.f32.mrb[0].mxu0
    %1358 = vdwg.mxu0
    %v1359 = vxor.u32 %v1356, 2147483648
    %v1360 = vmul.f32 %v1359, 1.442695
    %v1361 = vpow.pop %v1360
    %v1362 = vadd.f32 %v1361, 1.0
    %v1363 = vrcp.pop %v1362
    %v1364 = vmul.f32 1.0, %v1363
    %v1365 = vtanh.pop %v1356
    %v1366 = vmul.f32 %v1364, %v1276
    %1368 = vrot.lane.b32.xlu0 %v1365, 64
    %v1369 = vpop.permute.xlu0 %1368
    %v1371 = vmul.f32 %v1364, %v1369
    %1373 = vrot.lane.b32.xlu0 %v1371, 32
    %v1374 = vpop.permute.xlu0 %1373
    %v1376 = vadd.f32 %v1366, %v1374
    %v1377 = vtanh.pop %v1376
    %1379 = vrot.lane.b32.xlu0 %v1377, 64
    %v1380 = vpop.permute.xlu0 %1379
    %v1382 = vmul.f32 %v1364, %v1380
    %v1383 = vld [vmem:[#allocation3 + $0x3] sm:$0x1]
    %1385 = vrot.lane.b32.xlu0 %v1382, 32
    %v1386 = vpop.permute.xlu0 %1385
    %v1387 = vsel %vm180, %v1386, 0
    %1389 = vmatprep.subr.mxu0 0.0
    %1390 = vmatpush1.msra.mxu0 %v1084
    %1391 = vmatprep.subr.mxu0 0.0
    %1392 = vmatpush1.msra.mxu0 %v1085
    %1393 = vmatprep.subr.mxu0 0.0
    %1394 = vmatpush1.msra.mxu0 %v1086
    %1395 = vmatprep.subr.mxu0 0.0
    %1396 = vmatpush1.msra.mxu0 %v1087
    %1397 = vmatprep.subr.mxu0 0.0
    %1398 = vmatpush1.msra.mxu0 0.0
    %1399 = vmatprep.subr.mxu0 0.0
    %1400 = vmatpush1.msra.mxu0 0.0
    %1401 = vmatprep.subr.mxu0 0.0
    %1402 = vmatpush1.msra.mxu0 0.0
    %1403 = vmatprep.subr.mxu0 0.0
    %1404 = vmatpush1.msra.mxu0 0.0
    %1405 = vmatprep.subr.mxu0 0.0
    %1406 = vmatpush1.msra.mxu0 0.0
    %1407 = vmatprep.subr.mxu0 0.0
    %1408 = vmatpush1.msra.mxu0 0.0
    %1409 = vmatprep.subr.mxu0 0.0
    %1410 = vmatpush1.msra.mxu0 0.0
    %1411 = vmatprep.subr.mxu0 0.0
    %1412 = vmatpush1.msra.mxu0 0.0
    %1413 = vmatprep.subr.mxu0 0.0
    %1414 = vmatpush1.msra.mxu0 0.0
    %1415 = vmatprep.subr.mxu0 0.0
    %1416 = vmatpush1.msra.mxu0 0.0
    %1417 = vmatprep.subr.mxu0 0.0
    %1418 = vmatpush1.msra.mxu0 0.0
    %1419 = vmatprep.subr.mxu0 0.0
    %1420 = vmatpush1.msra.mxu0 0.0
    %1421 = vmatprep.subr.mxu0 0.0
    %1422 = vmatpush1.msra.mxu0 0.0
    %1423 = vmatprep.subr.mxu0 0.0
    %1424 = vmatpush1.msra.mxu0 0.0
    %1425 = vmatprep.subr.mxu0 0.0
    %1426 = vmatpush1.msra.mxu0 0.0
    %1427 = vmatprep.subr.mxu0 0.0
    %1428 = vmatpush1.msra.mxu0 0.0
    %1429 = vmatprep.subr.mxu0 0.0
    %1430 = vmatpush1.msra.mxu0 0.0
    %1431 = vmatprep.subr.mxu0 0.0
    %1432 = vmatpush1.msra.mxu0 0.0
    %1433 = vmatprep.subr.mxu0 0.0
    %1434 = vmatpush1.msra.mxu0 0.0
    %1435 = vmatprep.subr.mxu0 0.0
    %1436 = vmatpush1.msra.mxu0 0.0
    %1437 = vmatprep.subr.mxu0 0.0
    %1438 = vmatpush1.msra.mxu0 0.0
    %1439 = vmatprep.subr.mxu0 0.0
    %1440 = vmatpush1.msra.mxu0 0.0
    %1441 = vmatprep.subr.mxu0 0.0
    %1442 = vmatpush1.msra.mxu0 0.0
    %1443 = vmatprep.subr.mxu0 0.0
    %1444 = vmatpush1.msra.mxu0 0.0
    %1445 = vmatprep.subr.mxu0 0.0
    %1446 = vmatpush1.msra.mxu0 0.0
    %1447 = vmatprep.subr.mxu0 0.0
    %1448 = vmatpush1.msra.mxu0 0.0
    %1449 = vmatprep.subr.mxu0 0.0
    %1450 = vmatpush1.msra.mxu0 0.0
    %1451 = vmatprep.subr.mxu0 0.0
    %1452 = vmatpush1.msra.mxu0 0.0
    %1453 = vmatprep.mubr.f32.mxu0 0.0
    %1454 = vmatmul.mubr.f32.gmra.mrb[0].mxu0 %v1387
    %v1455 = vpop.f32.mrb[0].mxu0
    %v1456 = vadd.f32 %v1383, %v1455
    %v1457 = vpop.f32.mrb[0].mxu0
    %1458 = vdwg.mxu0
    %v1459 = vxor.u32 %v1456, 2147483648
    %v1460 = vmul.f32 %v1459, 1.442695
    %v1461 = vpow.pop %v1460
    %v1462 = vadd.f32 %v1461, 1.0
    %v1463 = vrcp.pop %v1462
    %v1464 = vmul.f32 1.0, %v1463
    %v1465 = vtanh.pop %v1456
    %v1466 = vmul.f32 %v1464, %v1376
    %1468 = vrot.lane.b32.xlu0 %v1465, 64
    %v1469 = vpop.permute.xlu0 %1468
    %v1471 = vmul.f32 %v1464, %v1469
    %1473 = vrot.lane.b32.xlu0 %v1471, 32
    %v1474 = vpop.permute.xlu0 %1473
    %v1476 = vadd.f32 %v1466, %v1474
    %v1477 = vtanh.pop %v1476
    %1479 = vrot.lane.b32.xlu0 %v1477, 64
    %v1480 = vpop.permute.xlu0 %1479
    %v1482 = vmul.f32 %v1464, %v1480
    %v1483 = vld [vmem:[#allocation3 + $0x4] sm:$0x1]
    %1485 = vrot.lane.b32.xlu0 %v1482, 32
    %v1486 = vpop.permute.xlu0 %1485
    %v1487 = vsel %vm180, %v1486, 0
    %1489 = vmatprep.subr.mxu0 0.0
    %1490 = vmatpush1.msra.mxu0 %v1084
    %1491 = vmatprep.subr.mxu0 0.0
    %1492 = vmatpush1.msra.mxu0 %v1085
    %1493 = vmatprep.subr.mxu0 0.0
    %1494 = vmatpush1.msra.mxu0 %v1086
    %1495 = vmatprep.subr.mxu0 0.0
    %1496 = vmatpush1.msra.mxu0 %v1087
    %1497 = vmatprep.subr.mxu0 0.0
    %1498 = vmatpush1.msra.mxu0 0.0
    %1499 = vmatprep.subr.mxu0 0.0
    %1500 = vmatpush1.msra.mxu0 0.0
    %1501 = vmatprep.subr.mxu0 0.0
    %1502 = vmatpush1.msra.mxu0 0.0
    %1503 = vmatprep.subr.mxu0 0.0
    %1504 = vmatpush1.msra.mxu0 0.0
    %1505 = vmatprep.subr.mxu0 0.0
    %1506 = vmatpush1.msra.mxu0 0.0
    %1507 = vmatprep.subr.mxu0 0.0
    %1508 = vmatpush1.msra.mxu0 0.0
    %1509 = vmatprep.subr.mxu0 0.0
    %1510 = vmatpush1.msra.mxu0 0.0
    %1511 = vmatprep.subr.mxu0 0.0
    %1512 = vmatpush1.msra.mxu0 0.0
    %1513 = vmatprep.subr.mxu0 0.0
    %1514 = vmatpush1.msra.mxu0 0.0
    %1515 = vmatprep.subr.mxu0 0.0
    %1516 = vmatpush1.msra.mxu0 0.0
    %1517 = vmatprep.subr.mxu0 0.0
    %1518 = vmatpush1.msra.mxu0 0.0
    %1519 = vmatprep.subr.mxu0 0.0
    %1520 = vmatpush1.msra.mxu0 0.0
    %1521 = vmatprep.subr.mxu0 0.0
    %1522 = vmatpush1.msra.mxu0 0.0
    %1523 = vmatprep.subr.mxu0 0.0
    %1524 = vmatpush1.msra.mxu0 0.0
    %1525 = vmatprep.subr.mxu0 0.0
    %1526 = vmatpush1.msra.mxu0 0.0
    %1527 = vmatprep.subr.mxu0 0.0
    %1528 = vmatpush1.msra.mxu0 0.0
    %1529 = vmatprep.subr.mxu0 0.0
    %1530 = vmatpush1.msra.mxu0 0.0
    %1531 = vmatprep.subr.mxu0 0.0
    %1532 = vmatpush1.msra.mxu0 0.0
    %1533 = vmatprep.subr.mxu0 0.0
    %1534 = vmatpush1.msra.mxu0 0.0
    %1535 = vmatprep.subr.mxu0 0.0
    %1536 = vmatpush1.msra.mxu0 0.0
    %1537 = vmatprep.subr.mxu0 0.0
    %1538 = vmatpush1.msra.mxu0 0.0
    %1539 = vmatprep.subr.mxu0 0.0
    %1540 = vmatpush1.msra.mxu0 0.0
    %1541 = vmatprep.subr.mxu0 0.0
    %1542 = vmatpush1.msra.mxu0 0.0
    %1543 = vmatprep.subr.mxu0 0.0
    %1544 = vmatpush1.msra.mxu0 0.0
    %1545 = vmatprep.subr.mxu0 0.0
    %1546 = vmatpush1.msra.mxu0 0.0
    %1547 = vmatprep.subr.mxu0 0.0
    %1548 = vmatpush1.msra.mxu0 0.0
    %1549 = vmatprep.subr.mxu0 0.0
    %1550 = vmatpush1.msra.mxu0 0.0
    %1551 = vmatprep.subr.mxu0 0.0
    %1552 = vmatpush1.msra.mxu0 0.0
    %1553 = vmatprep.mubr.f32.mxu0 0.0
    %1554 = vmatmul.mubr.f32.gmra.mrb[0].mxu0 %v1487
    %v1555 = vpop.f32.mrb[0].mxu0
    %v1556 = vadd.f32 %v1483, %v1555
    %v1557 = vpop.f32.mrb[0].mxu0
    %1558 = vdwg.mxu0
    %v1559 = vxor.u32 %v1556, 2147483648
    %v1560 = vmul.f32 %v1559, 1.442695
    %v1561 = vpow.pop %v1560
    %v1562 = vadd.f32 %v1561, 1.0
    %v1563 = vrcp.pop %v1562
    %v1564 = vmul.f32 1.0, %v1563
    %v1565 = vtanh.pop %v1556
    %v1566 = vmul.f32 %v1564, %v1476
    %1568 = vrot.lane.b32.xlu0 %v1565, 64
    %v1569 = vpop.permute.xlu0 %1568
    %v1571 = vmul.f32 %v1564, %v1569
    %1573 = vrot.lane.b32.xlu0 %v1571, 32
    %v1574 = vpop.permute.xlu0 %1573
    %v1576 = vadd.f32 %v1566, %v1574
    %v1577 = vtanh.pop %v1576
    %1579 = vrot.lane.b32.xlu0 %v1577, 64
    %v1580 = vpop.permute.xlu0 %1579
    %v1582 = vmul.f32 %v1564, %v1580
    %v1583 = vld [vmem:[#allocation3 + $0x5] sm:$0x1]
    %1585 = vrot.lane.b32.xlu0 %v1582, 32
    %v1586 = vpop.permute.xlu0 %1585
    %v1587 = vsel %vm180, %v1586, 0
    %1589 = vmatprep.subr.mxu0 0.0
    %1590 = vmatpush1.msra.mxu0 %v1084
    %1591 = vmatprep.subr.mxu0 0.0
    %1592 = vmatpush1.msra.mxu0 %v1085
    %1593 = vmatprep.subr.mxu0 0.0
    %1594 = vmatpush1.msra.mxu0 %v1086
    %1595 = vmatprep.subr.mxu0 0.0
    %1596 = vmatpush1.msra.mxu0 %v1087
    %1597 = vmatprep.subr.mxu0 0.0
    %1598 = vmatpush1.msra.mxu0 0.0
    %1599 = vmatprep.subr.mxu0 0.0
    %1600 = vmatpush1.msra.mxu0 0.0
    %1601 = vmatprep.subr.mxu0 0.0
    %1602 = vmatpush1.msra.mxu0 0.0
    %1603 = vmatprep.subr.mxu0 0.0
    %1604 = vmatpush1.msra.mxu0 0.0
    %1605 = vmatprep.subr.mxu0 0.0
    %1606 = vmatpush1.msra.mxu0 0.0
    %1607 = vmatprep.subr.mxu0 0.0
    %1608 = vmatpush1.msra.mxu0 0.0
    %1609 = vmatprep.subr.mxu0 0.0
    %1610 = vmatpush1.msra.mxu0 0.0
    %1611 = vmatprep.subr.mxu0 0.0
    %1612 = vmatpush1.msra.mxu0 0.0
    %1613 = vmatprep.subr.mxu0 0.0
    %1614 = vmatpush1.msra.mxu0 0.0
    %1615 = vmatprep.subr.mxu0 0.0
    %1616 = vmatpush1.msra.mxu0 0.0
    %1617 = vmatprep.subr.mxu0 0.0
    %1618 = vmatpush1.msra.mxu0 0.0
    %1619 = vmatprep.subr.mxu0 0.0
    %1620 = vmatpush1.msra.mxu0 0.0
    %1621 = vmatprep.subr.mxu0 0.0
    %1622 = vmatpush1.msra.mxu0 0.0
    %1623 = vmatprep.subr.mxu0 0.0
    %1624 = vmatpush1.msra.mxu0 0.0
    %1625 = vmatprep.subr.mxu0 0.0
    %1626 = vmatpush1.msra.mxu0 0.0
    %1627 = vmatprep.subr.mxu0 0.0
    %1628 = vmatpush1.msra.mxu0 0.0
    %1629 = vmatprep.subr.mxu0 0.0
    %1630 = vmatpush1.msra.mxu0 0.0
    %1631 = vmatprep.subr.mxu0 0.0
    %1632 = vmatpush1.msra.mxu0 0.0
    %1633 = vmatprep.subr.mxu0 0.0
    %1634 = vmatpush1.msra.mxu0 0.0
    %1635 = vmatprep.subr.mxu0 0.0
    %1636 = vmatpush1.msra.mxu0 0.0
    %1637 = vmatprep.subr.mxu0 0.0
    %1638 = vmatpush1.msra.mxu0 0.0
    %1639 = vmatprep.subr.mxu0 0.0
    %1640 = vmatpush1.msra.mxu0 0.0
    %1641 = vmatprep.subr.mxu0 0.0
    %1642 = vmatpush1.msra.mxu0 0.0
    %1643 = vmatprep.subr.mxu0 0.0
    %1644 = vmatpush1.msra.mxu0 0.0
    %1645 = vmatprep.subr.mxu0 0.0
    %1646 = vmatpush1.msra.mxu0 0.0
    %1647 = vmatprep.subr.mxu0 0.0
    %1648 = vmatpush1.msra.mxu0 0.0
    %1649 = vmatprep.subr.mxu0 0.0
    %1650 = vmatpush1.msra.mxu0 0.0
    %1651 = vmatprep.subr.mxu0 0.0
    %1652 = vmatpush1.msra.mxu0 0.0
    %1653 = vmatprep.mubr.f32.mxu0 0.0
    %1654 = vmatmul.mubr.f32.gmra.mrb[0].mxu0 %v1587
    %v1655 = vpop.f32.mrb[0].mxu0
    %v1656 = vadd.f32 %v1583, %v1655
    %v1657 = vpop.f32.mrb[0].mxu0
    %1658 = vdwg.mxu0
    %v1659 = vxor.u32 %v1656, 2147483648
    %v1660 = vmul.f32 %v1659, 1.442695
    %v1661 = vpow.pop %v1660
    %v1662 = vadd.f32 %v1661, 1.0
    %v1663 = vrcp.pop %v1662
    %v1664 = vmul.f32 1.0, %v1663
    %v1665 = vtanh.pop %v1656
    %v1666 = vmul.f32 %v1664, %v1576
    %1668 = vrot.lane.b32.xlu0 %v1665, 64
    %v1669 = vpop.permute.xlu0 %1668
    %v1671 = vmul.f32 %v1664, %v1669
    %1673 = vrot.lane.b32.xlu0 %v1671, 32
    %v1674 = vpop.permute.xlu0 %1673
    %v1676 = vadd.f32 %v1666, %v1674
    %v1677 = vtanh.pop %v1676
    %1679 = vrot.lane.b32.xlu0 %v1677, 64
    %v1680 = vpop.permute.xlu0 %1679
    %v1682 = vmul.f32 %v1664, %v1680
    %v1683 = vld [vmem:[#allocation3 + $0x6] sm:$0x1]
    %1685 = vrot.lane.b32.xlu0 %v1682, 32
    %v1686 = vpop.permute.xlu0 %1685
    %v1687 = vsel %vm180, %v1686, 0
    %1689 = vmatprep.subr.mxu0 0.0
    %1690 = vmatpush1.msra.mxu0 %v1084
    %1691 = vmatprep.subr.mxu0 0.0
    %1692 = vmatpush1.msra.mxu0 %v1085
    %1693 = vmatprep.subr.mxu0 0.0
    %1694 = vmatpush1.msra.mxu0 %v1086
    %1695 = vmatprep.subr.mxu0 0.0
    %1696 = vmatpush1.msra.mxu0 %v1087
    %1697 = vmatprep.subr.mxu0 0.0
    %1698 = vmatpush1.msra.mxu0 0.0
    %1699 = vmatprep.subr.mxu0 0.0
    %1700 = vmatpush1.msra.mxu0 0.0
    %1701 = vmatprep.subr.mxu0 0.0
    %1702 = vmatpush1.msra.mxu0 0.0
    %1703 = vmatprep.subr.mxu0 0.0
    %1704 = vmatpush1.msra.mxu0 0.0
    %1705 = vmatprep.subr.mxu0 0.0
    %1706 = vmatpush1.msra.mxu0 0.0
    %1707 = vmatprep.subr.mxu0 0.0
    %1708 = vmatpush1.msra.mxu0 0.0
    %1709 = vmatprep.subr.mxu0 0.0
    %1710 = vmatpush1.msra.mxu0 0.0
    %1711 = vmatprep.subr.mxu0 0.0
    %1712 = vmatpush1.msra.mxu0 0.0
    %1713 = vmatprep.subr.mxu0 0.0
    %1714 = vmatpush1.msra.mxu0 0.0
    %1715 = vmatprep.subr.mxu0 0.0
    %1716 = vmatpush1.msra.mxu0 0.0
    %1717 = vmatprep.subr.mxu0 0.0
    %1718 = vmatpush1.msra.mxu0 0.0
    %1719 = vmatprep.subr.mxu0 0.0
    %1720 = vmatpush1.msra.mxu0 0.0
    %1721 = vmatprep.subr.mxu0 0.0
    %1722 = vmatpush1.msra.mxu0 0.0
    %1723 = vmatprep.subr.mxu0 0.0
    %1724 = vmatpush1.msra.mxu0 0.0
    %1725 = vmatprep.subr.mxu0 0.0
    %1726 = vmatpush1.msra.mxu0 0.0
    %1727 = vmatprep.subr.mxu0 0.0
    %1728 = vmatpush1.msra.mxu0 0.0
    %1729 = vmatprep.subr.mxu0 0.0
    %1730 = vmatpush1.msra.mxu0 0.0
    %1731 = vmatprep.subr.mxu0 0.0
    %1732 = vmatpush1.msra.mxu0 0.0
    %1733 = vmatprep.subr.mxu0 0.0
    %1734 = vmatpush1.msra.mxu0 0.0
    %1735 = vmatprep.subr.mxu0 0.0
    %1736 = vmatpush1.msra.mxu0 0.0
    %1737 = vmatprep.subr.mxu0 0.0
    %1738 = vmatpush1.msra.mxu0 0.0
    %1739 = vmatprep.subr.mxu0 0.0
    %1740 = vmatpush1.msra.mxu0 0.0
    %1741 = vmatprep.subr.mxu0 0.0
    %1742 = vmatpush1.msra.mxu0 0.0
    %1743 = vmatprep.subr.mxu0 0.0
    %1744 = vmatpush1.msra.mxu0 0.0
    %1745 = vmatprep.subr.mxu0 0.0
    %1746 = vmatpush1.msra.mxu0 0.0
    %1747 = vmatprep.subr.mxu0 0.0
    %1748 = vmatpush1.msra.mxu0 0.0
    %1749 = vmatprep.subr.mxu0 0.0
    %1750 = vmatpush1.msra.mxu0 0.0
    %1751 = vmatprep.subr.mxu0 0.0
    %1752 = vmatpush1.msra.mxu0 0.0
    %1753 = vmatprep.mubr.f32.mxu0 0.0
    %1754 = vmatmul.mubr.f32.gmra.mrb[0].mxu0 %v1687
    %v1755 = vpop.f32.mrb[0].mxu0
    %v1756 = vadd.f32 %v1683, %v1755
    %v1757 = vpop.f32.mrb[0].mxu0
    %1758 = vdwg.mxu0
    %v1759 = vxor.u32 %v1756, 2147483648
    %v1760 = vmul.f32 %v1759, 1.442695
    %v1761 = vpow.pop %v1760
    %v1762 = vadd.f32 %v1761, 1.0
    %v1763 = vrcp.pop %v1762
    %v1764 = vmul.f32 1.0, %v1763
    %v1765 = vtanh.pop %v1756
    %v1766 = vmul.f32 %v1764, %v1676
    %1768 = vrot.lane.b32.xlu0 %v1765, 64
    %v1769 = vpop.permute.xlu0 %1768
    %v1771 = vmul.f32 %v1764, %v1769
    %1773 = vrot.lane.b32.xlu0 %v1771, 32
    %v1774 = vpop.permute.xlu0 %1773
    %v1776 = vadd.f32 %v1766, %v1774
    %v1777 = vtanh.pop %v1776
    %1779 = vrot.lane.b32.xlu0 %v1777, 64
    %v1780 = vpop.permute.xlu0 %1779
    %v1782 = vmul.f32 %v1764, %v1780
    %v1783 = vld [vmem:[#allocation3 + $0x7] sm:$0x1]
    %1785 = vrot.lane.b32.xlu0 %v1782, 32
    %v1786 = vpop.permute.xlu0 %1785
    %v1787 = vsel %vm180, %v1786, 0
    %1789 = vmatprep.subr.mxu0 0.0
    %1790 = vmatpush1.msra.mxu0 %v1084
    %1791 = vmatprep.subr.mxu0 0.0
    %1792 = vmatpush1.msra.mxu0 %v1085
    %1793 = vmatprep.subr.mxu0 0.0
    %1794 = vmatpush1.msra.mxu0 %v1086
    %1795 = vmatprep.subr.mxu0 0.0
    %1796 = vmatpush1.msra.mxu0 %v1087
    %1797 = vmatprep.subr.mxu0 0.0
    %1798 = vmatpush1.msra.mxu0 0.0
    %1799 = vmatprep.subr.mxu0 0.0
    %1800 = vmatpush1.msra.mxu0 0.0
    %1801 = vmatprep.subr.mxu0 0.0
    %1802 = vmatpush1.msra.mxu0 0.0
    %1803 = vmatprep.subr.mxu0 0.0
    %1804 = vmatpush1.msra.mxu0 0.0
    %1805 = vmatprep.subr.mxu0 0.0
    %1806 = vmatpush1.msra.mxu0 0.0
    %1807 = vmatprep.subr.mxu0 0.0
    %1808 = vmatpush1.msra.mxu0 0.0
    %1809 = vmatprep.subr.mxu0 0.0
    %1810 = vmatpush1.msra.mxu0 0.0
    %1811 = vmatprep.subr.mxu0 0.0
    %1812 = vmatpush1.msra.mxu0 0.0
    %1813 = vmatprep.subr.mxu0 0.0
    %1814 = vmatpush1.msra.mxu0 0.0
    %1815 = vmatprep.subr.mxu0 0.0
    %1816 = vmatpush1.msra.mxu0 0.0
    %1817 = vmatprep.subr.mxu0 0.0
    %1818 = vmatpush1.msra.mxu0 0.0
    %1819 = vmatprep.subr.mxu0 0.0
    %1820 = vmatpush1.msra.mxu0 0.0
    %1821 = vmatprep.subr.mxu0 0.0
    %1822 = vmatpush1.msra.mxu0 0.0
    %1823 = vmatprep.subr.mxu0 0.0
    %1824 = vmatpush1.msra.mxu0 0.0
    %1825 = vmatprep.subr.mxu0 0.0
    %1826 = vmatpush1.msra.mxu0 0.0
    %1827 = vmatprep.subr.mxu0 0.0
    %1828 = vmatpush1.msra.mxu0 0.0
    %1829 = vmatprep.subr.mxu0 0.0
    %1830 = vmatpush1.msra.mxu0 0.0
    %1831 = vmatprep.subr.mxu0 0.0
    %1832 = vmatpush1.msra.mxu0 0.0
    %1833 = vmatprep.subr.mxu0 0.0
    %1834 = vmatpush1.msra.mxu0 0.0
    %1835 = vmatprep.subr.mxu0 0.0
    %1836 = vmatpush1.msra.mxu0 0.0
    %1837 = vmatprep.subr.mxu0 0.0
    %1838 = vmatpush1.msra.mxu0 0.0
    %1839 = vmatprep.subr.mxu0 0.0
    %1840 = vmatpush1.msra.mxu0 0.0
    %1841 = vmatprep.subr.mxu0 0.0
    %1842 = vmatpush1.msra.mxu0 0.0
    %1843 = vmatprep.subr.mxu0 0.0
    %1844 = vmatpush1.msra.mxu0 0.0
    %1845 = vmatprep.subr.mxu0 0.0
    %1846 = vmatpush1.msra.mxu0 0.0
    %1847 = vmatprep.subr.mxu0 0.0
    %1848 = vmatpush1.msra.mxu0 0.0
    %1849 = vmatprep.subr.mxu0 0.0
    %1850 = vmatpush1.msra.mxu0 0.0
    %1851 = vmatprep.subr.mxu0 0.0
    %1852 = vmatpush1.msra.mxu0 0.0
    %1853 = vmatprep.mubr.f32.mxu0 0.0
    %1854 = vmatmul.mubr.f32.gmra.mrb[0].mxu0 %v1787
    %v1855 = vpop.f32.mrb[0].mxu0
    %v1856 = vadd.f32 %v1783, %v1855
    %v1857 = vpop.f32.mrb[0].mxu0
    %1858 = vdwg.mxu0
    %v1859 = vxor.u32 %v1856, 2147483648
    %v1860 = vmul.f32 %v1859, 1.442695
    %v1861 = vpow.pop %v1860
    %v1862 = vadd.f32 %v1861, 1.0
    %v1863 = vrcp.pop %v1862
    %v1864 = vmul.f32 1.0, %v1863
    %v1865 = vtanh.pop %v1856
    %v1866 = vmul.f32 %v1864, %v1776
    %1868 = vrot.lane.b32.xlu0 %v1865, 64
    %v1869 = vpop.permute.xlu0 %1868
    %v1871 = vmul.f32 %v1864, %v1869
    %1873 = vrot.lane.b32.xlu0 %v1871, 32
    %v1874 = vpop.permute.xlu0 %1873
    %v1876 = vadd.f32 %v1866, %v1874
    %v1877 = vtanh.pop %v1876
    %1879 = vrot.lane.b32.xlu0 %v1877, 64
    %v1880 = vpop.permute.xlu0 %1879
    %v1882 = vmul.f32 %v1864, %v1880
    %1884 = vrot.lane.b32.xlu0 %v1882, 32
    %v1885 = vpop.permute.xlu0 %1884
    %1887 = vst.msk [vmem:[#allocation12] sm:$0x1] %vm282, %v1885
    %v1888 = vld [vmem:[#allocation10] sm:$0x1]
    %v1889 = vld [vmem:[%s7] sm:$0xff]
    %v1890 = vld [vmem:[%s7 + $0x8] sm:$0xff]
    %v1891 = vld [vmem:[%s7 + $0x10] sm:$0xff]
    %v1892 = vld [vmem:[%s7 + $0x18] sm:$0xff]
    %v1893 = vld [vmem:[#allocation9] sm:$0x1]
    %v1895 = vsel %vm180, %v1888, 0
    %1897 = vmatprep.subr.mxu0 0.0
    %1898 = vmatpush1.msra.mxu0 %v1889
    %1899 = vmatprep.subr.mxu0 0.0
    %1900 = vmatpush1.msra.mxu0 %v1890
    %1901 = vmatprep.subr.mxu0 0.0
    %1902 = vmatpush1.msra.mxu0 %v1891
    %1903 = vmatprep.subr.mxu0 0.0
    %1904 = vmatpush1.msra.mxu0 %v1892
    %1905 = vmatprep.subr.mxu0 0.0
    %1906 = vmatpush1.msra.mxu0 0.0
    %1907 = vmatprep.subr.mxu0 0.0
    %1908 = vmatpush1.msra.mxu0 0.0
    %1909 = vmatprep.subr.mxu0 0.0
    %1910 = vmatpush1.msra.mxu0 0.0
    %1911 = vmatprep.subr.mxu0 0.0
    %1912 = vmatpush1.msra.mxu0 0.0
    %1913 = vmatprep.subr.mxu0 0.0
    %1914 = vmatpush1.msra.mxu0 0.0
    %1915 = vmatprep.subr.mxu0 0.0
    %1916 = vmatpush1.msra.mxu0 0.0
    %1917 = vmatprep.subr.mxu0 0.0
    %1918 = vmatpush1.msra.mxu0 0.0
    %1919 = vmatprep.subr.mxu0 0.0
    %1920 = vmatpush1.msra.mxu0 0.0
    %1921 = vmatprep.subr.mxu0 0.0
    %1922 = vmatpush1.msra.mxu0 0.0
    %1923 = vmatprep.subr.mxu0 0.0
    %1924 = vmatpush1.msra.mxu0 0.0
    %1925 = vmatprep.subr.mxu0 0.0
    %1926 = vmatpush1.msra.mxu0 0.0
    %1927 = vmatprep.subr.mxu0 0.0
    %1928 = vmatpush1.msra.mxu0 0.0
    %1929 = vmatprep.subr.mxu0 0.0
    %1930 = vmatpush1.msra.mxu0 0.0
    %1931 = vmatprep.subr.mxu0 0.0
    %1932 = vmatpush1.msra.mxu0 0.0
    %1933 = vmatprep.subr.mxu0 0.0
    %1934 = vmatpush1.msra.mxu0 0.0
    %1935 = vmatprep.subr.mxu0 0.0
    %1936 = vmatpush1.msra.mxu0 0.0
    %1937 = vmatprep.subr.mxu0 0.0
    %1938 = vmatpush1.msra.mxu0 0.0
    %1939 = vmatprep.subr.mxu0 0.0
    %1940 = vmatpush1.msra.mxu0 0.0
    %1941 = vmatprep.subr.mxu0 0.0
    %1942 = vmatpush1.msra.mxu0 0.0
    %1943 = vmatprep.subr.mxu0 0.0
    %1944 = vmatpush1.msra.mxu0 0.0
    %1945 = vmatprep.subr.mxu0 0.0
    %1946 = vmatpush1.msra.mxu0 0.0
    %1947 = vmatprep.subr.mxu0 0.0
    %1948 = vmatpush1.msra.mxu0 0.0
    %1949 = vmatprep.subr.mxu0 0.0
    %1950 = vmatpush1.msra.mxu0 0.0
    %1951 = vmatprep.subr.mxu0 0.0
    %1952 = vmatpush1.msra.mxu0 0.0
    %1953 = vmatprep.subr.mxu0 0.0
    %1954 = vmatpush1.msra.mxu0 0.0
    %1955 = vmatprep.subr.mxu0 0.0
    %1956 = vmatpush1.msra.mxu0 0.0
    %1957 = vmatprep.subr.mxu0 0.0
    %1958 = vmatpush1.msra.mxu0 0.0
    %1959 = vmatprep.subr.mxu0 0.0
    %1960 = vmatpush1.msra.mxu0 0.0
    %1961 = vmatprep.mubr.f32.mxu0 0.0
    %1962 = vmatmul.mubr.f32.gmra.mrb[0].mxu0 %v1895
    %v1963 = vpop.f32.mrb[0].mxu0
    %v1964 = vadd.f32 %v1893, %v1963
    %v1965 = vpop.f32.mrb[0].mxu0
    %1966 = vdwg.mxu0
    %vm1967 = vcmask 57344
    %1968 = vst.msk [vmem:[%s10] sm:$0x1] %vm1967, %v1964
    // Predicated region
    $region58: #{rnn_forward.1} parent=1 // pred_check
      _
    $region59: #{rnn_forward.1} parent=1 // pred_check_branch
      %1970 = sbr.rel (0) target = $region61
    $region60: #{rnn_forward.1} parent=1 // pred_region
      _
    $region61: #{rnn_forward.1} parent=1 // pred_fallthru
      _
    // Predicated region
    $region62: #{rnn_forward.1} parent=1 // pred_check
      _
    $region63: #{rnn_forward.1} parent=1 // pred_check_branch
      %1972 = sbr.rel (0) target = $region65
    $region64: #{rnn_forward.1} parent=1 // pred_region
      %s1974 = ssub.s32 16, 16
      %1975 = vsyncadd [#allocation6], %s1974
      %s1977 = sshll.u32 [#allocation12], 4
      %s1978 = int_to_ptr.vmem [resolvable:$true] %s1977
      %1980 = dma.vmem_to_hbm [thread:$0]  %s1978, 16, %s11, [#allocation6]
    $region65: #{rnn_forward.1} parent=1 // pred_fallthru
      _
    // Predicated region
    $region66: #{rnn_forward.1} parent=1 // pred_check
      _
    $region67: #{rnn_forward.1} parent=1 // pred_check_branch
      %1982 = sbr.rel (0) target = $region69
    $region68: #{rnn_forward.1} parent=1 // pred_region
      _
    $region69: #{rnn_forward.1} parent=1 // pred_fallthru
      _
    // Predicated region
    $region70: #{rnn_forward.1} parent=1 // pred_check
      _
    $region71: #{rnn_forward.1} parent=1 // pred_check_branch
      %1984 = sbr.rel (0) target = $region73
    $region72: #{rnn_forward.1} parent=1 // pred_region
      %1985 = dma.done [#allocation6], 16
    $region73: #{rnn_forward.1} parent=1 // pred_fallthru
      _
    %1986 = vsyncpa [#allocation5], 1
    %1987 = vsyncpa [#allocation8], 1
    %1988 = vsyncpa [#allocation11], 1
    %1989 = vsyncpa [#allocation6], 1

</llo_original>
